<compile_context>
chip_gen: v5e
topology: v5e:2x2
jax: 0.10.0
libtpu: 0.0.40
codegen_flags: <defaults>
</compile_context>

<pallas_src>
import functools
import math

import jax
import jax.numpy as jnp
from jax.experimental import pallas as pl
from jax.experimental.pallas import tpu as pltpu

LANE = 128  # TPU lane width; all feature dims are padded to a multiple of this.


def _round_up(n, m):
    return ((n + m - 1) // m) * m


# ------------------------------ fused kernel ------------------------------- #

def _vae_fused_kernel(*refs, n_enc, n_dec, z_dim):
    """Whole VAE forward for one batch tile, entirely in VMEM.

    Ref order:
      x, eps,
      [enc (w, b)] * n_enc, (w_head, b_head), [dec (w, b)] * n_dec, (w_rec, b_rec),
      recon_out, latents_out, eps_pad_scratch
    """
    n_w = 2 * (n_enc + 1 + n_dec + 1)
    x_ref, eps_ref = refs[0], refs[1]
    w_refs = refs[2:2 + n_w]
    recon_ref, lat_ref, eps_buf = refs[2 + n_w], refs[3 + n_w], refs[4 + n_w]

    def dense(h, idx, relu):
        w = w_refs[idx][...]                 # bf16 (K, N) -> native MXU format
        b = w_refs[idx + 1][...]             # f32  (1, N), broadcasts over rows
        y = jnp.dot(h.astype(jnp.bfloat16), w,
                    preferred_element_type=jnp.float32) + b
        return jnp.maximum(y, 0.0) if relu else y

    # --- encoder hidden MLP: Linear -> ReLU per layer ---
    h = x_ref[...]                           # already bf16
    idx = 0
    for _ in range(n_enc):
        h = dense(h, idx, relu=True)
        idx += 2

    # --- merged gaussian head: one (H, 2*Zp) matmul, split on a 128 boundary ---
    stats = dense(h, idx, relu=False)        # (tb, 2*zp) f32
    idx += 2
    zp = stats.shape[-1] // 2                # lane-aligned split
    mu = stats[:, :zp]
    lv = stats[:, zp:]

    # eps arrives unpadded (tb, z_dim); pad to zp lanes in VMEM so padded latent
    # lanes of z stay exactly zero (mu / lv padded lanes are already zero).
    eps_buf[...] = jnp.zeros_like(eps_buf)
    eps_buf[:, :z_dim] = eps_ref[...]
    z = mu + jnp.exp(0.5 * lv) * eps_buf[...]

    # --- decoder hidden MLP: Linear -> ReLU per layer ---
    d = z
    for _ in range(n_dec):
        d = dense(d, idx, relu=True)
        idx += 2

    # --- reconstruction Linear -> Sigmoid (binary=True), exact divide ---
    logits = dense(d, idx, relu=False)
    recon = 1.0 / (1.0 + jnp.exp(-logits))

    recon_ref[...] = recon.astype(recon_ref.dtype)
    # One lane-dense writeback for all the small tensors: [ z | mu | logvar ].
    lat_ref[...] = jnp.concatenate([z, stats], axis=-1).astype(lat_ref.dtype)


# ----------------------------- parameter setup ----------------------------- #

def xavier_normal(key, fan_in, fan_out):
    # matches torch.nn.init.xavier_normal_: std = sqrt(2 / (fan_in + fan_out))
    std = math.sqrt(2.0 / (fan_in + fan_out))
    return std * jax.random.normal(key, (fan_in, fan_out), jnp.float32)


def init_vae_params(key, dims):
    """Unpadded parameters, laid out as y = x @ W + b (W is (in, out))."""
    x_dim, z_dim, encode_dim, decode_dim = dims
    params = {"enc_hidden": [], "dec_hidden": []}

    enc_sizes = [x_dim] + list(encode_dim)
    for fan_in, fan_out in zip(enc_sizes[:-1], enc_sizes[1:]):
        key, k = jax.random.split(key)
        params["enc_hidden"].append(
            (xavier_normal(k, fan_in, fan_out), jnp.zeros((fan_out,), jnp.float32)))

    key, k1, k2 = jax.random.split(key, 3)
    params["w_mu"] = xavier_normal(k1, enc_sizes[-1], z_dim)
    params["b_mu"] = jnp.zeros((z_dim,), jnp.float32)
    params["w_lv"] = xavier_normal(k2, enc_sizes[-1], z_dim)
    params["b_lv"] = jnp.zeros((z_dim,), jnp.float32)

    dec_sizes = [z_dim] + list(decode_dim)
    for fan_in, fan_out in zip(dec_sizes[:-1], dec_sizes[1:]):
        key, k = jax.random.split(key)
        params["dec_hidden"].append(
            (xavier_normal(k, fan_in, fan_out), jnp.zeros((fan_out,), jnp.float32)))

    key, k = jax.random.split(key)
    params["w_rec"] = xavier_normal(k, dec_sizes[-1], x_dim)
    params["b_rec"] = jnp.zeros((x_dim,), jnp.float32)
    return params


def pad_and_pack_params(params):
    """Zero-pad every feature dim up to a LANE multiple, cast weights to bf16
    (native MXU format), keep biases as (1, N) f32, merge the mu/logvar heads
    into one (H, 2*Zp) weight, and pack in the flat order the kernel expects."""
    def pad_w(w):
        ip = _round_up(w.shape[0], LANE)
        op = _round_up(w.shape[1], LANE)
        return jnp.pad(w, ((0, ip - w.shape[0]),
                           (0, op - w.shape[1]))).astype(jnp.bfloat16)

    def pad_b(b):
        op = _round_up(b.shape[0], LANE)
        return jnp.pad(b, (0, op - b.shape[0])).reshape(1, op).astype(jnp.float32)

    packed = []
    for w, b in params["enc_hidden"]:
        packed += [pad_w(w), pad_b(b)]
    packed += [jnp.concatenate([pad_w(params["w_mu"]), pad_w(params["w_lv"])], axis=1),
               jnp.concatenate([pad_b(params["b_mu"]), pad_b(params["b_lv"])], axis=1)]
    for w, b in params["dec_hidden"]:
        packed += [pad_w(w), pad_b(b)]
    packed += [pad_w(params["w_rec"]), pad_b(params["b_rec"])]
    return packed


# ------------------------------- VAE forward ------------------------------- #

def vae_forward(packed, x, eps, *, n_enc, n_dec, tb=None):
    """Fused-Pallas equivalent of VAE.forward(x): recon_x (plus z, mu, logvar)."""
    B, x_dim = x.shape
    z_dim = eps.shape[1]
    xp = _round_up(x_dim, LANE)
    zp = _round_up(z_dim, LANE)

    # Single grid step by default: v5e/v6e are single-TensorCore (extra grid
    # steps are pure ~0.35us overhead) and small batches don't amortize a
    # 2-way split on v7x.  Pass tb explicitly for large batches.
    if tb is None:
        tb = _round_up(B, 8)
    bp = _round_up(B, tb)
    n_tiles = bp // tb

    x_p = jnp.pad(x, ((0, bp - B), (0, xp - x_dim))).astype(jnp.bfloat16)
    eps_p = jnp.pad(eps.astype(jnp.float32), ((0, bp - B), (0, 0)))  # rows only

    x_spec = pl.BlockSpec((tb, xp), lambda i: (i, 0))
    eps_spec = pl.BlockSpec((tb, z_dim), lambda i: (i, 0))
    # Weights/biases: full array resident each step (constant block index).
    w_specs = [pl.BlockSpec(t.shape, lambda i: (0, 0)) for t in packed]
    recon_spec = pl.BlockSpec((tb, xp), lambda i: (i, 0))
    lat_spec = pl.BlockSpec((tb, 3 * zp), lambda i: (i, 0))

    out_shape = (
        jax.ShapeDtypeStruct((bp, xp), jnp.float32),       # recon (main output)
        jax.ShapeDtypeStruct((bp, 3 * zp), jnp.bfloat16),  # [ z | mu | logvar ]
    )

    # Advisory cost hint so XLA schedules this microsecond-scale custom call.
    flops = 2 * bp * sum(int(w.shape[0]) * int(w.shape[1]) for w in packed[0::2])
    transcendentals = bp * (zp + xp)
    bytes_accessed = (
        x_p.size * x_p.dtype.itemsize
        + eps_p.size * eps_p.dtype.itemsize
        + sum(int(t.size) * t.dtype.itemsize for t in packed)
        + bp * xp * 4 + bp * 3 * zp * 2)

    recon_p, lat_p = pl.pallas_call(
        functools.partial(_vae_fused_kernel, n_enc=n_enc, n_dec=n_dec, z_dim=z_dim),
        out_shape=out_shape,
        grid=(n_tiles,),
        in_specs=[x_spec, eps_spec] + w_specs,
        out_specs=(recon_spec, lat_spec),
        scratch_shapes=[pltpu.VMEM((tb, zp), jnp.float32)],   # eps lane-pad buffer
        compiler_params=pltpu.CompilerParams(
            dimension_semantics=("parallel",)),  # shards tiles across TCs when n_tiles > 1
        cost_estimate=pl.CostEstimate(
            flops=flops, transcendentals=transcendentals,
            bytes_accessed=bytes_accessed),
    )(x_p, eps_p, *packed)

    recon = recon_p[:B, :x_dim]
    z = lat_p[:B, :z_dim].astype(jnp.float32)
    mu = lat_p[:B, zp:zp + z_dim].astype(jnp.float32)
    logvar = lat_p[:B, 2 * zp:2 * zp + z_dim].astype(jnp.float32)
    return recon, z, mu, logvar


def vae_forward_ref(params, x, eps):
    """Pure-JAX reference mirroring the kernel's bf16-weight / f32-accumulate
    matmul path on the unpadded parameters."""
    def mm(h, w):
        return jnp.dot(h.astype(jnp.bfloat16), w.astype(jnp.bfloat16),
                       preferred_element_type=jnp.float32)
    h = x
    for w, b in params["enc_hidden"]:
        h = jnp.maximum(mm(h, w) + b, 0.0)
    mu = mm(h, params["w_mu"]) + params["b_mu"]
    logvar = mm(h, params["w_lv"]) + params["b_lv"]
    z = mu + jnp.exp(0.5 * logvar) * eps
    d = z
    for w, b in params["dec_hidden"]:
        d = jnp.maximum(mm(d, w) + b, 0.0)
    recon = jax.nn.sigmoid(mm(d, params["w_rec"]) + params["b_rec"])
    return recon, z, mu, logvar


# ---------------------------------- main ----------------------------------- #

if __name__ == "__main__":
    key = jax.random.PRNGKey(0)

    # dims = [x_dim, z_dim, encode_dim, decode_dim]  (SCALE/Ressac-style VAE)
    x_dim, z_dim = 256, 16
    encode_dim, decode_dim = [64, 32], [32]
    batch = 128   # one full-height MXU tile; runs as a single grid step

    kp, kx, ke = jax.random.split(key, 3)
    params = init_vae_params(kp, [x_dim, z_dim, encode_dim, decode_dim])
    packed = pad_and_pack_params(params)

    # binary data (binary=True -> Sigmoid output); 0/1 is exact in bf16
    x = (jax.random.uniform(kx, (batch, x_dim)) > 0.5).astype(jnp.float32)
    # reparameterization noise (torch.randn inside GaussianSample); passed in
    # explicitly so the kernel stays deterministic and checkable.
    eps = jax.random.normal(ke, (batch, z_dim), jnp.float32)

    fwd = jax.jit(functools.partial(
        vae_forward, n_enc=len(encode_dim), n_dec=len(decode_dim)))
    recon_x, z, mu, logvar = fwd(packed, x, eps)
    jax.block_until_ready(recon_x)

    ref_recon, ref_z, ref_mu, ref_lv = vae_forward_ref(params, x, eps)
    assert recon_x.shape == (batch, x_dim)
    assert z.shape == (batch, z_dim)
    # z/mu/logvar come back as bf16 (merged lane-dense slab): ~4e-3 rel rounding.
    assert jnp.allclose(mu, ref_mu, atol=3e-2, rtol=3e-2)
    assert jnp.allclose(logvar, ref_lv, atol=3e-2, rtol=3e-2)
    assert jnp.allclose(z, ref_z, atol=3e-2, rtol=3e-2)
    # recon stays f32 with an exact sigmoid; only accumulation-order noise.
    assert jnp.allclose(recon_x, ref_recon, atol=5e-3, rtol=0.0)

    print("KERNEL_OK")
</pallas_src>

<mosaic_0001>
module attributes {stable_mosaic.version = 11 : i64} {
  func.func @_vae_fused_kernel(%arg0: i32, %arg1: memref<128x256xbf16, #tpu.memory_space<vmem>>, %arg2: memref<128x16xf32, #tpu.memory_space<vmem>>, %arg3: memref<256x128xbf16, #tpu.memory_space<vmem>>, %arg4: memref<1x128xf32, #tpu.memory_space<vmem>>, %arg5: memref<128x128xbf16, #tpu.memory_space<vmem>>, %arg6: memref<1x128xf32, #tpu.memory_space<vmem>>, %arg7: memref<128x256xbf16, #tpu.memory_space<vmem>>, %arg8: memref<1x256xf32, #tpu.memory_space<vmem>>, %arg9: memref<128x128xbf16, #tpu.memory_space<vmem>>, %arg10: memref<1x128xf32, #tpu.memory_space<vmem>>, %arg11: memref<128x256xbf16, #tpu.memory_space<vmem>>, %arg12: memref<1x256xf32, #tpu.memory_space<vmem>>, %arg13: memref<128x256xf32, #tpu.memory_space<vmem>>, %arg14: memref<128x384xbf16, #tpu.memory_space<vmem>>, %arg15: memref<128x128xf32, #tpu.memory_space<vmem>>) attributes {dimension_semantics = [#tpu.dimension_semantics<parallel>], iteration_bounds = array<i64: 1>, scalar_prefetch = 0 : i64, scratch_operands = 1 : i64, tpu.core_type = #tpu.core_type<tc>, window_params = [{transform_indices = @transform_0, window_bounds = array<i64: 128, 256>}, {transform_indices = @transform_1, window_bounds = array<i64: 128, 16>}, {pipeline_mode = #tpu.pipeline_mode<synchronous>, transform_indices = @transform_2, window_bounds = array<i64: 256, 128>}, {pipeline_mode = #tpu.pipeline_mode<synchronous>, transform_indices = @transform_3, window_bounds = array<i64: 1, 128>}, {pipeline_mode = #tpu.pipeline_mode<synchronous>, transform_indices = @transform_4, window_bounds = array<i64: 128, 128>}, {pipeline_mode = #tpu.pipeline_mode<synchronous>, transform_indices = @transform_5, window_bounds = array<i64: 1, 128>}, {pipeline_mode = #tpu.pipeline_mode<synchronous>, transform_indices = @transform_6, window_bounds = array<i64: 128, 256>}, {pipeline_mode = #tpu.pipeline_mode<synchronous>, transform_indices = @transform_7, window_bounds = array<i64: 1, 256>}, {pipeline_mode = #tpu.pipeline_mode<synchronous>, transform_indices = @transform_8, window_bounds = array<i64: 128, 128>}, {pipeline_mode = #tpu.pipeline_mode<synchronous>, transform_indices = @transform_9, window_bounds = array<i64: 1, 128>}, {pipeline_mode = #tpu.pipeline_mode<synchronous>, transform_indices = @transform_10, window_bounds = array<i64: 128, 256>}, {pipeline_mode = #tpu.pipeline_mode<synchronous>, transform_indices = @transform_11, window_bounds = array<i64: 1, 256>}, {transform_indices = @transform_12, window_bounds = array<i64: 128, 256>}, {transform_indices = @transform_13, window_bounds = array<i64: 128, 384>}]} {
    %c0 = arith.constant 0 : index
    %c0_0 = arith.constant 0 : index
    %0 = vector.load %arg1[%c0, %c0_0] : memref<128x256xbf16, #tpu.memory_space<vmem>>, vector<128x256xbf16>
    %c0_1 = arith.constant 0 : index
    %c0_2 = arith.constant 0 : index
    %1 = vector.load %arg3[%c0_1, %c0_2] : memref<256x128xbf16, #tpu.memory_space<vmem>>, vector<256x128xbf16>
    %c0_3 = arith.constant 0 : index
    %c0_4 = arith.constant 0 : index
    %2 = vector.load %arg4[%c0_3, %c0_4] : memref<1x128xf32, #tpu.memory_space<vmem>>, vector<1x128xf32>
    %cst = arith.constant dense<0.000000e+00> : vector<128x128xf32>
    %3 = tpu.matmul %0, %1, %cst {dimension_numbers = #tpu.dot_dimension_numbers<[1], [0], [0], [1], [0, 0, 1, 1], [], []>} : vector<128x256xbf16>, vector<256x128xbf16>, vector<128x128xf32> -> vector<128x128xf32>
    %4 = vector.broadcast %2 : vector<1x128xf32> to vector<128x128xf32>
    %5 = arith.addf %3, %4 : vector<128x128xf32>
    %cst_5 = arith.constant 0.000000e+00 : f32
    %6 = vector.broadcast %cst_5 : f32 to vector<128x128xf32>
    %7 = arith.maximumf %5, %6 : vector<128x128xf32>
    %c0_6 = arith.constant 0 : index
    %c0_7 = arith.constant 0 : index
    %8 = vector.load %arg5[%c0_6, %c0_7] : memref<128x128xbf16, #tpu.memory_space<vmem>>, vector<128x128xbf16>
    %c0_8 = arith.constant 0 : index
    %c0_9 = arith.constant 0 : index
    %9 = vector.load %arg6[%c0_8, %c0_9] : memref<1x128xf32, #tpu.memory_space<vmem>>, vector<1x128xf32>
    %10 = arith.truncf %7 : vector<128x128xf32> to vector<128x128xbf16>
    %cst_10 = arith.constant dense<0.000000e+00> : vector<128x128xf32>
    %11 = tpu.matmul %10, %8, %cst_10 {dimension_numbers = #tpu.dot_dimension_numbers<[1], [0], [0], [1], [0, 0, 1, 1], [], []>} : vector<128x128xbf16>, vector<128x128xbf16>, vector<128x128xf32> -> vector<128x128xf32>
    %12 = vector.broadcast %9 : vector<1x128xf32> to vector<128x128xf32>
    %13 = arith.addf %11, %12 : vector<128x128xf32>
    %cst_11 = arith.constant 0.000000e+00 : f32
    %14 = vector.broadcast %cst_11 : f32 to vector<128x128xf32>
    %15 = arith.maximumf %13, %14 : vector<128x128xf32>
    %c0_12 = arith.constant 0 : index
    %c0_13 = arith.constant 0 : index
    %16 = vector.load %arg7[%c0_12, %c0_13] : memref<128x256xbf16, #tpu.memory_space<vmem>>, vector<128x256xbf16>
    %c0_14 = arith.constant 0 : index
    %c0_15 = arith.constant 0 : index
    %17 = vector.load %arg8[%c0_14, %c0_15] : memref<1x256xf32, #tpu.memory_space<vmem>>, vector<1x256xf32>
    %18 = arith.truncf %15 : vector<128x128xf32> to vector<128x128xbf16>
    %cst_16 = arith.constant dense<0.000000e+00> : vector<128x256xf32>
    %19 = tpu.matmul %18, %16, %cst_16 {dimension_numbers = #tpu.dot_dimension_numbers<[1], [0], [0], [1], [0, 0, 1, 1], [], []>} : vector<128x128xbf16>, vector<128x256xbf16>, vector<128x256xf32> -> vector<128x256xf32>
    %20 = vector.broadcast %17 : vector<1x256xf32> to vector<128x256xf32>
    %21 = arith.addf %19, %20 : vector<128x256xf32>
    %22 = vector.extract_strided_slice %21 {offsets = [0, 0], sizes = [128, 128], strides = [1, 1]} : vector<128x256xf32> to vector<128x128xf32>
    %23 = vector.extract_strided_slice %21 {offsets = [0, 128], sizes = [128, 128], strides = [1, 1]} : vector<128x256xf32> to vector<128x128xf32>
    %cst_17 = arith.constant 0.000000e+00 : f32
    %24 = vector.broadcast %cst_17 : f32 to vector<128x128xf32>
    %c0_18 = arith.constant 0 : index
    %c0_19 = arith.constant 0 : index
    %25 = vector.load %arg15[%c0_18, %c0_19] : memref<128x128xf32, #tpu.memory_space<vmem>>, vector<128x128xf32>
    tpu.vector_store %arg15[%c0_18, %c0_19], %24 {strides = array<i32>} : memref<128x128xf32, #tpu.memory_space<vmem>>, vector<128x128xf32>,
    %c0_20 = arith.constant 0 : index
    %c0_21 = arith.constant 0 : index
    %26 = vector.load %arg2[%c0_20, %c0_21] : memref<128x16xf32, #tpu.memory_space<vmem>>, vector<128x16xf32>
    %c0_22 = arith.constant 0 : index
    %c0_23 = arith.constant 0 : index
    %27 = vector.load %arg15[%c0_22, %c0_23] : memref<128x128xf32, #tpu.memory_space<vmem>>, vector<128x16xf32>
    tpu.vector_store %arg15[%c0_22, %c0_23], %26 {strides = array<i32>} : memref<128x128xf32, #tpu.memory_space<vmem>>, vector<128x16xf32>,
    %cst_24 = arith.constant 5.000000e-01 : f32
    %28 = vector.broadcast %cst_24 : f32 to vector<128x128xf32>
    %29 = arith.mulf %28, %23 : vector<128x128xf32>
    %30 = math.exp %29 : vector<128x128xf32>
    %c0_25 = arith.constant 0 : index
    %c0_26 = arith.constant 0 : index
    %31 = vector.load %arg15[%c0_25, %c0_26] : memref<128x128xf32, #tpu.memory_space<vmem>>, vector<128x128xf32>
    %32 = arith.mulf %30, %31 : vector<128x128xf32>
    %33 = arith.addf %22, %32 : vector<128x128xf32>
    %c0_27 = arith.constant 0 : index
    %c0_28 = arith.constant 0 : index
    %34 = vector.load %arg9[%c0_27, %c0_28] : memref<128x128xbf16, #tpu.memory_space<vmem>>, vector<128x128xbf16>
    %c0_29 = arith.constant 0 : index
    %c0_30 = arith.constant 0 : index
    %35 = vector.load %arg10[%c0_29, %c0_30] : memref<1x128xf32, #tpu.memory_space<vmem>>, vector<1x128xf32>
    %36 = arith.truncf %33 : vector<128x128xf32> to vector<128x128xbf16>
    %cst_31 = arith.constant dense<0.000000e+00> : vector<128x128xf32>
    %37 = tpu.matmul %36, %34, %cst_31 {dimension_numbers = #tpu.dot_dimension_numbers<[1], [0], [0], [1], [0, 0, 1, 1], [], []>} : vector<128x128xbf16>, vector<128x128xbf16>, vector<128x128xf32> -> vector<128x128xf32>
    %38 = vector.broadcast %35 : vector<1x128xf32> to vector<128x128xf32>
    %39 = arith.addf %37, %38 : vector<128x128xf32>
    %cst_32 = arith.constant 0.000000e+00 : f32
    %40 = vector.broadcast %cst_32 : f32 to vector<128x128xf32>
    %41 = arith.maximumf %39, %40 : vector<128x128xf32>
    %c0_33 = arith.constant 0 : index
    %c0_34 = arith.constant 0 : index
    %42 = vector.load %arg11[%c0_33, %c0_34] : memref<128x256xbf16, #tpu.memory_space<vmem>>, vector<128x256xbf16>
    %c0_35 = arith.constant 0 : index
    %c0_36 = arith.constant 0 : index
    %43 = vector.load %arg12[%c0_35, %c0_36] : memref<1x256xf32, #tpu.memory_space<vmem>>, vector<1x256xf32>
    %44 = arith.truncf %41 : vector<128x128xf32> to vector<128x128xbf16>
    %cst_37 = arith.constant dense<0.000000e+00> : vector<128x256xf32>
    %45 = tpu.matmul %44, %42, %cst_37 {dimension_numbers = #tpu.dot_dimension_numbers<[1], [0], [0], [1], [0, 0, 1, 1], [], []>} : vector<128x128xbf16>, vector<128x256xbf16>, vector<128x256xf32> -> vector<128x256xf32>
    %46 = vector.broadcast %43 : vector<1x256xf32> to vector<128x256xf32>
    %47 = arith.addf %45, %46 : vector<128x256xf32>
    %cst_38 = arith.constant 0.000000e+00 : f32
    %48 = vector.broadcast %cst_38 : f32 to vector<128x256xf32>
    %49 = arith.subf %48, %47 : vector<128x256xf32>
    %50 = math.exp %49 : vector<128x256xf32>
    %cst_39 = arith.constant 1.000000e+00 : f32
    %51 = vector.broadcast %cst_39 : f32 to vector<128x256xf32>
    %52 = arith.addf %51, %50 : vector<128x256xf32>
    %cst_40 = arith.constant 1.000000e+00 : f32
    %53 = vector.broadcast %cst_40 : f32 to vector<128x256xf32>
    %54 = arith.divf %53, %52 : vector<128x256xf32>
    %c0_41 = arith.constant 0 : index
    %c0_42 = arith.constant 0 : index
    %55 = vector.load %arg13[%c0_41, %c0_42] : memref<128x256xf32, #tpu.memory_space<vmem>>, vector<128x256xf32>
    tpu.vector_store %arg13[%c0_41, %c0_42], %54 {strides = array<i32>} : memref<128x256xf32, #tpu.memory_space<vmem>>, vector<128x256xf32>,
    %56 = tpu.concatenate %33, %21 in 1 : vector<128x128xf32>, vector<128x256xf32> -> vector<128x384xf32>
    %57 = arith.truncf %56 : vector<128x384xf32> to vector<128x384xbf16>
    %c0_43 = arith.constant 0 : index
    %c0_44 = arith.constant 0 : index
    %58 = vector.load %arg14[%c0_43, %c0_44] : memref<128x384xbf16, #tpu.memory_space<vmem>>, vector<128x384xbf16>
    tpu.vector_store %arg14[%c0_43, %c0_44], %57 {strides = array<i32>} : memref<128x384xbf16, #tpu.memory_space<vmem>>, vector<128x384xbf16>,
    return
  }
  func.func @transform_0(%arg0: i32) -> (i32, i32) {
    %c0_i32 = arith.constant 0 : i32
    %c0_i32_0 = arith.constant 0 : i32
    return %arg0, %c0_i32 : i32, i32
  }
  func.func @transform_1(%arg0: i32) -> (i32, i32) {
    %c0_i32 = arith.constant 0 : i32
    %c0_i32_0 = arith.constant 0 : i32
    return %arg0, %c0_i32 : i32, i32
  }
  func.func @transform_2(%arg0: i32) -> (i32, i32) {
    %c0_i32 = arith.constant 0 : i32
    %c0_i32_0 = arith.constant 0 : i32
    %c0_i32_1 = arith.constant 0 : i32
    return %c0_i32, %c0_i32_0 : i32, i32
  }
  func.func @transform_3(%arg0: i32) -> (i32, i32) {
    %c0_i32 = arith.constant 0 : i32
    %c0_i32_0 = arith.constant 0 : i32
    %c0_i32_1 = arith.constant 0 : i32
    return %c0_i32, %c0_i32_0 : i32, i32
  }
  func.func @transform_4(%arg0: i32) -> (i32, i32) {
    %c0_i32 = arith.constant 0 : i32
    %c0_i32_0 = arith.constant 0 : i32
    %c0_i32_1 = arith.constant 0 : i32
    return %c0_i32, %c0_i32_0 : i32, i32
  }
  func.func @transform_5(%arg0: i32) -> (i32, i32) {
    %c0_i32 = arith.constant 0 : i32
    %c0_i32_0 = arith.constant 0 : i32
    %c0_i32_1 = arith.constant 0 : i32
    return %c0_i32, %c0_i32_0 : i32, i32
  }
  func.func @transform_6(%arg0: i32) -> (i32, i32) {
    %c0_i32 = arith.constant 0 : i32
    %c0_i32_0 = arith.constant 0 : i32
    %c0_i32_1 = arith.constant 0 : i32
    return %c0_i32, %c0_i32_0 : i32, i32
  }
  func.func @transform_7(%arg0: i32) -> (i32, i32) {
    %c0_i32 = arith.constant 0 : i32
    %c0_i32_0 = arith.constant 0 : i32
    %c0_i32_1 = arith.constant 0 : i32
    return %c0_i32, %c0_i32_0 : i32, i32
  }
  func.func @transform_8(%arg0: i32) -> (i32, i32) {
    %c0_i32 = arith.constant 0 : i32
    %c0_i32_0 = arith.constant 0 : i32
    %c0_i32_1 = arith.constant 0 : i32
    return %c0_i32, %c0_i32_0 : i32, i32
  }
  func.func @transform_9(%arg0: i32) -> (i32, i32) {
    %c0_i32 = arith.constant 0 : i32
    %c0_i32_0 = arith.constant 0 : i32
    %c0_i32_1 = arith.constant 0 : i32
    return %c0_i32, %c0_i32_0 : i32, i32
  }
  func.func @transform_10(%arg0: i32) -> (i32, i32) {
    %c0_i32 = arith.constant 0 : i32
    %c0_i32_0 = arith.constant 0 : i32
    %c0_i32_1 = arith.constant 0 : i32
    return %c0_i32, %c0_i32_0 : i32, i32
  }
  func.func @transform_11(%arg0: i32) -> (i32, i32) {
    %c0_i32 = arith.constant 0 : i32
    %c0_i32_0 = arith.constant 0 : i32
    %c0_i32_1 = arith.constant 0 : i32
    return %c0_i32, %c0_i32_0 : i32, i32
  }
  func.func @transform_12(%arg0: i32) -> (i32, i32) {
    %c0_i32 = arith.constant 0 : i32
    %c0_i32_0 = arith.constant 0 : i32
    return %arg0, %c0_i32 : i32, i32
  }
  func.func @transform_13(%arg0: i32) -> (i32, i32) {
    %c0_i32 = arith.constant 0 : i32
    %c0_i32_0 = arith.constant 0 : i32
    return %arg0, %c0_i32 : i32, i32
  }
}

</mosaic_0001>

<llo_original>
// kernel: vae_forward.1
$region0: #{vae_forward.1}
  #allocation0 [shape = 'u32[]', space=smem, size = 0x4, offset = 0x4, fixed_abs, tag = 'smem constant byte address 0x4 - core index']
  #allocation1 [shape = 'u32[72,128]{1,0:T(1,128)}', space=vmem, size = 0x9000, scoped, tag = 'internal scratch']
  #allocation2 [shape = 'f32[128,128]{1,0:T(8,128)}', space=vmem, size = 0x10000, scoped, tag = 'scratch operand']
  %s0 = inlined_call_operand.vmem [shape: bf16[128,256], index: 0, kind: input, shape index: {}]
  %s1 = inlined_call_operand.vmem [shape: f32[128,16], index: 1, kind: input, shape index: {}]
  %s2 = inlined_call_operand.vmem [shape: bf16[256,128], index: 2, kind: input, shape index: {}]
  %s3 = inlined_call_operand.hbm [shape: f32[1,128], index: 3, kind: input, shape index: {}]
  %s4 = inlined_call_operand.vmem [shape: bf16[128,128], index: 4, kind: input, shape index: {}]
  %s5 = inlined_call_operand.hbm [shape: f32[1,128], index: 5, kind: input, shape index: {}]
  %s6 = inlined_call_operand.vmem [shape: bf16[128,256], index: 6, kind: input, shape index: {}]
  %s7 = inlined_call_operand.vmem [shape: f32[1,256], index: 7, kind: input, shape index: {}]
  %s8 = inlined_call_operand.vmem [shape: bf16[128,128], index: 8, kind: input, shape index: {}]
  %s9 = inlined_call_operand.vmem [shape: f32[1,128], index: 9, kind: input, shape index: {}]
  %s10 = inlined_call_operand.vmem [shape: bf16[128,256], index: 10, kind: input, shape index: {}]
  %s11 = inlined_call_operand.vmem [shape: f32[1,256], index: 11, kind: input, shape index: {}]
  %s12 = inlined_call_operand.hbm [shape: f32[128,256], index: 12, kind: output, shape index: {0}]
  %s13 = inlined_call_operand.vmem [shape: bf16[128,384], index: 13, kind: output, shape index: {1}]
  %14 = xla_tuple %s12, %s13
  %s15 = sld [smem:[#allocation0]]
  $region74: #{vae_forward.1} parent=0
    _
  %s17 = ssub.s32 1, %s15
  %s18 = scalar_select 0, %s17, %s15
  $region1: #{vae_forward.1} parent=0
    #allocation3 [shape = 'u8[512]{0}', space=vmem, size = 0x400, scoped, tag = 'input window, operand 3, single buffered']
    #allocation4 [shape = 's32[1]{0}', space=sflag, size = 0x4, scoped, tag = 'scoped memory for vae_forward.1']
    #allocation5 [shape = 's32[1]{0}', space=sflag, size = 0x4, scoped, tag = 'scoped memory for vae_forward.1']
    #allocation6 [shape = 'u8[512]{0}', space=vmem, size = 0x400, scoped, tag = 'input window, operand 5, single buffered']
    #allocation7 [shape = 's32[1]{0}', space=sflag, size = 0x4, scoped, tag = 'scoped memory for vae_forward.1']
    #allocation8 [shape = 'u8[131072]{0}', space=vmem, size = 0x20000, scoped, tag = 'output window, operand 0, single buffered']
    %19 = vsyncpa [#allocation4], 0
    %20 = vsyncpa [#allocation7], 0
    %21 = vsyncpa [#allocation5], 0
    // Predicated region
    $region2: #{vae_forward.1} parent=1 // pred_check
      _
    $region3: #{vae_forward.1} parent=1 // pred_check_branch
      %23 = sbr.rel (0) target = $region5
    $region4: #{vae_forward.1} parent=1 // pred_region
      _
    $region5: #{vae_forward.1} parent=1 // pred_fallthru
      _
    // Predicated region
    $region6: #{vae_forward.1} parent=1 // pred_check
      _
    $region7: #{vae_forward.1} parent=1 // pred_check_branch
      %25 = sbr.rel (0) target = $region9
    $region8: #{vae_forward.1} parent=1 // pred_region
      _
    $region9: #{vae_forward.1} parent=1 // pred_fallthru
      _
    // Predicated region
    $region10: #{vae_forward.1} parent=1 // pred_check
      _
    $region11: #{vae_forward.1} parent=1 // pred_check_branch
      %27 = sbr.rel (0) target = $region13
    $region12: #{vae_forward.1} parent=1 // pred_region
      _
    $region13: #{vae_forward.1} parent=1 // pred_fallthru
      _
    // Predicated region
    $region14: #{vae_forward.1} parent=1 // pred_check
      _
    $region15: #{vae_forward.1} parent=1 // pred_check_branch
      %29 = sbr.rel (0) target = $region17
    $region16: #{vae_forward.1} parent=1 // pred_region
      %31 = vsyncadd [#allocation4], 0
      %s33 = sshll.u32 %s3, 4
      %s34 = int_to_ptr.hbm [resolvable:$true] %s33
      %s35 = sshll.u32 [#allocation3], 4
      %s36 = int_to_ptr.vmem [resolvable:$true] %s35
      %38 = dma.hbm_to_vmem [thread:$0]  %s34, 16, %s36, [#allocation4]
    $region17: #{vae_forward.1} parent=1 // pred_fallthru
      _
    // Predicated region
    $region18: #{vae_forward.1} parent=1 // pred_check
      _
    $region19: #{vae_forward.1} parent=1 // pred_check_branch
      %40 = sbr.rel (0) target = $region21
    $region20: #{vae_forward.1} parent=1 // pred_region
      _
    $region21: #{vae_forward.1} parent=1 // pred_fallthru
      _
    // Predicated region
    $region22: #{vae_forward.1} parent=1 // pred_check
      _
    $region23: #{vae_forward.1} parent=1 // pred_check_branch
      %42 = sbr.rel (0) target = $region25
    $region24: #{vae_forward.1} parent=1 // pred_region
      %44 = vsyncadd [#allocation7], 0
      %s46 = sshll.u32 %s5, 4
      %s47 = int_to_ptr.hbm [resolvable:$true] %s46
      %s48 = sshll.u32 [#allocation6], 4
      %s49 = int_to_ptr.vmem [resolvable:$true] %s48
      %51 = dma.hbm_to_vmem [thread:$0]  %s47, 16, %s49, [#allocation7]
    $region25: #{vae_forward.1} parent=1 // pred_fallthru
      _
    // Predicated region
    $region26: #{vae_forward.1} parent=1 // pred_check
      _
    $region27: #{vae_forward.1} parent=1 // pred_check_branch
      %53 = sbr.rel (0) target = $region29
    $region28: #{vae_forward.1} parent=1 // pred_region
      _
    $region29: #{vae_forward.1} parent=1 // pred_fallthru
      _
    // Predicated region
    $region30: #{vae_forward.1} parent=1 // pred_check
      _
    $region31: #{vae_forward.1} parent=1 // pred_check_branch
      %55 = sbr.rel (0) target = $region33
    $region32: #{vae_forward.1} parent=1 // pred_region
      _
    $region33: #{vae_forward.1} parent=1 // pred_fallthru
      _
    // Predicated region
    $region34: #{vae_forward.1} parent=1 // pred_check
      _
    $region35: #{vae_forward.1} parent=1 // pred_check_branch
      %57 = sbr.rel (0) target = $region37
    $region36: #{vae_forward.1} parent=1 // pred_region
      _
    $region37: #{vae_forward.1} parent=1 // pred_fallthru
      _
    // Predicated region
    $region38: #{vae_forward.1} parent=1 // pred_check
      _
    $region39: #{vae_forward.1} parent=1 // pred_check_branch
      %59 = sbr.rel (0) target = $region41
    $region40: #{vae_forward.1} parent=1 // pred_region
      _
    $region41: #{vae_forward.1} parent=1 // pred_fallthru
      _
    // Predicated region
    $region42: #{vae_forward.1} parent=1 // pred_check
      _
    $region43: #{vae_forward.1} parent=1 // pred_check_branch
      %61 = sbr.rel (0) target = $region45
    $region44: #{vae_forward.1} parent=1 // pred_region
      _
    $region45: #{vae_forward.1} parent=1 // pred_fallthru
      _
    // Predicated region
    $region46: #{vae_forward.1} parent=1 // pred_check
      _
    $region47: #{vae_forward.1} parent=1 // pred_check_branch
      %63 = sbr.rel (0) target = $region49
    $region48: #{vae_forward.1} parent=1 // pred_region
      _
    $region49: #{vae_forward.1} parent=1 // pred_fallthru
      _
    // Predicated region
    $region50: #{vae_forward.1} parent=1 // pred_check
      _
    $region51: #{vae_forward.1} parent=1 // pred_check_branch
      %65 = sbr.rel (0) target = $region53
    $region52: #{vae_forward.1} parent=1 // pred_region
      %67 = dma.done [#allocation4], 16
    $region53: #{vae_forward.1} parent=1 // pred_fallthru
      _
    // Predicated region
    $region54: #{vae_forward.1} parent=1 // pred_check
      _
    $region55: #{vae_forward.1} parent=1 // pred_check_branch
      %69 = sbr.rel (0) target = $region57
    $region56: #{vae_forward.1} parent=1 // pred_region
      %71 = dma.done [#allocation7], 16
    $region57: #{vae_forward.1} parent=1 // pred_fallthru
      _
    %v72 = vld [vmem:[%s0] sm:$0xff]
    %v73 = vld [vmem:[%s0 + $0x8] sm:$0xff]
    %v74 = vld [vmem:[%s0 + $0x10] sm:$0xff]
    %v75 = vld [vmem:[%s0 + $0x18] sm:$0xff]
    %v76 = vld [vmem:[%s0 + $0x20] sm:$0xff]
    %v77 = vld [vmem:[%s0 + $0x28] sm:$0xff]
    %v78 = vld [vmem:[%s0 + $0x30] sm:$0xff]
    %v79 = vld [vmem:[%s0 + $0x38] sm:$0xff]
    %v80 = vld [vmem:[%s0 + $0x40] sm:$0xff]
    %v81 = vld [vmem:[%s0 + $0x48] sm:$0xff]
    %v82 = vld [vmem:[%s0 + $0x50] sm:$0xff]
    %v83 = vld [vmem:[%s0 + $0x58] sm:$0xff]
    %v84 = vld [vmem:[%s0 + $0x60] sm:$0xff]
    %v85 = vld [vmem:[%s0 + $0x68] sm:$0xff]
    %v86 = vld [vmem:[%s0 + $0x70] sm:$0xff]
    %v87 = vld [vmem:[%s0 + $0x78] sm:$0xff]
    %v88 = vld [vmem:[%s2] sm:$0xf]
    %v89 = vld [vmem:[%s2 + $0x4] sm:$0xf]
    %v90 = vld [vmem:[%s2 + $0x8] sm:$0xf]
    %v91 = vld [vmem:[%s2 + $0xc] sm:$0xf]
    %v92 = vld [vmem:[%s2 + $0x10] sm:$0xf]
    %v93 = vld [vmem:[%s2 + $0x14] sm:$0xf]
    %v94 = vld [vmem:[%s2 + $0x18] sm:$0xf]
    %v95 = vld [vmem:[%s2 + $0x1c] sm:$0xf]
    %v96 = vld [vmem:[%s2 + $0x20] sm:$0xf]
    %v97 = vld [vmem:[%s2 + $0x24] sm:$0xf]
    %v98 = vld [vmem:[%s2 + $0x28] sm:$0xf]
    %v99 = vld [vmem:[%s2 + $0x2c] sm:$0xf]
    %v100 = vld [vmem:[%s2 + $0x30] sm:$0xf]
    %v101 = vld [vmem:[%s2 + $0x34] sm:$0xf]
    %v102 = vld [vmem:[%s2 + $0x38] sm:$0xf]
    %v103 = vld [vmem:[%s2 + $0x3c] sm:$0xf]
    %v104 = vld [vmem:[%s2 + $0x40] sm:$0xf]
    %v105 = vld [vmem:[%s2 + $0x44] sm:$0xf]
    %v106 = vld [vmem:[%s2 + $0x48] sm:$0xf]
    %v107 = vld [vmem:[%s2 + $0x4c] sm:$0xf]
    %v108 = vld [vmem:[%s2 + $0x50] sm:$0xf]
    %v109 = vld [vmem:[%s2 + $0x54] sm:$0xf]
    %v110 = vld [vmem:[%s2 + $0x58] sm:$0xf]
    %v111 = vld [vmem:[%s2 + $0x5c] sm:$0xf]
    %v112 = vld [vmem:[%s2 + $0x60] sm:$0xf]
    %v113 = vld [vmem:[%s2 + $0x64] sm:$0xf]
    %v114 = vld [vmem:[%s2 + $0x68] sm:$0xf]
    %v115 = vld [vmem:[%s2 + $0x6c] sm:$0xf]
    %v116 = vld [vmem:[%s2 + $0x70] sm:$0xf]
    %v117 = vld [vmem:[%s2 + $0x74] sm:$0xf]
    %v118 = vld [vmem:[%s2 + $0x78] sm:$0xf]
    %v119 = vld [vmem:[%s2 + $0x7c] sm:$0xf]
    %v120 = vld [vmem:[#allocation3] sm:$0x1]
    %v122 = vperm.slane %v120, 0
    %v140 = vunpack.c.l.b16 %v72
    %v141 = vunpack.c.h.b16 %v72
    %v142 = vunpack.c.l.b16 %v73
    %v143 = vunpack.c.h.b16 %v73
    %v144 = vunpack.c.l.b16 %v74
    %v145 = vunpack.c.h.b16 %v74
    %v146 = vunpack.c.l.b16 %v75
    %v147 = vunpack.c.h.b16 %v75
    %v148 = vunpack.c.l.b16 %v76
    %v149 = vunpack.c.h.b16 %v76
    %v150 = vunpack.c.l.b16 %v77
    %v151 = vunpack.c.h.b16 %v77
    %v152 = vunpack.c.l.b16 %v78
    %v153 = vunpack.c.h.b16 %v78
    %v154 = vunpack.c.l.b16 %v79
    %v155 = vunpack.c.h.b16 %v79
    %v156 = vunpack.c.l.b16 %v80
    %v157 = vunpack.c.h.b16 %v80
    %v158 = vunpack.c.l.b16 %v81
    %v159 = vunpack.c.h.b16 %v81
    %v160 = vunpack.c.l.b16 %v82
    %v161 = vunpack.c.h.b16 %v82
    %v162 = vunpack.c.l.b16 %v83
    %v163 = vunpack.c.h.b16 %v83
    %v164 = vunpack.c.l.b16 %v84
    %v165 = vunpack.c.h.b16 %v84
    %v166 = vunpack.c.l.b16 %v85
    %v167 = vunpack.c.h.b16 %v85
    %v168 = vunpack.c.l.b16 %v86
    %v169 = vunpack.c.h.b16 %v86
    %v170 = vunpack.c.l.b16 %v87
    %v171 = vunpack.c.h.b16 %v87
    %v172 = vpack.c.b16 %v142, %v140
    %v173 = vpack.c.b16 %v143, %v141
    %v174 = vpack.c.b16 %v146, %v144
    %v175 = vpack.c.b16 %v147, %v145
    %v176 = vpack.c.b16 %v150, %v148
    %v177 = vpack.c.b16 %v151, %v149
    %v178 = vpack.c.b16 %v154, %v152
    %v179 = vpack.c.b16 %v155, %v153
    %v180 = vpack.c.b16 %v158, %v156
    %v181 = vpack.c.b16 %v159, %v157
    %v182 = vpack.c.b16 %v162, %v160
    %v183 = vpack.c.b16 %v163, %v161
    %v184 = vpack.c.b16 %v166, %v164
    %v185 = vpack.c.b16 %v167, %v165
    %v186 = vpack.c.b16 %v170, %v168
    %v187 = vpack.c.b16 %v171, %v169
    %v236 = vunpack.c.l.b16 %v88
    %v237 = vunpack.c.l.b16 %v89
    %v238 = vunpack.c.l.b16 %v90
    %v239 = vunpack.c.l.b16 %v91
    %v240 = vunpack.c.l.b16 %v92
    %v241 = vunpack.c.l.b16 %v93
    %v242 = vunpack.c.l.b16 %v94
    %v243 = vunpack.c.l.b16 %v95
    %v244 = vunpack.c.l.b16 %v96
    %v245 = vunpack.c.l.b16 %v97
    %v246 = vunpack.c.l.b16 %v98
    %v247 = vunpack.c.l.b16 %v99
    %v248 = vunpack.c.l.b16 %v100
    %v249 = vunpack.c.l.b16 %v101
    %v250 = vunpack.c.l.b16 %v102
    %v251 = vunpack.c.l.b16 %v103
    %v252 = vunpack.c.l.b16 %v104
    %v253 = vunpack.c.l.b16 %v105
    %v254 = vunpack.c.l.b16 %v106
    %v255 = vunpack.c.l.b16 %v107
    %v256 = vunpack.c.l.b16 %v108
    %v257 = vunpack.c.l.b16 %v109
    %v258 = vunpack.c.l.b16 %v110
    %v259 = vunpack.c.l.b16 %v111
    %v260 = vunpack.c.l.b16 %v112
    %v261 = vunpack.c.l.b16 %v113
    %v262 = vunpack.c.l.b16 %v114
    %v263 = vunpack.c.l.b16 %v115
    %v264 = vunpack.c.l.b16 %v116
    %v265 = vunpack.c.l.b16 %v117
    %v266 = vunpack.c.l.b16 %v118
    %v267 = vunpack.c.l.b16 %v119
    %v268 = vpack.c.b16 %v237, %v236
    %v269 = vpack.c.b16 %v239, %v238
    %v270 = vpack.c.b16 %v241, %v240
    %v271 = vpack.c.b16 %v243, %v242
    %v272 = vpack.c.b16 %v245, %v244
    %v273 = vpack.c.b16 %v247, %v246
    %v274 = vpack.c.b16 %v249, %v248
    %v275 = vpack.c.b16 %v251, %v250
    %v276 = vpack.c.b16 %v253, %v252
    %v277 = vpack.c.b16 %v255, %v254
    %v278 = vpack.c.b16 %v257, %v256
    %v279 = vpack.c.b16 %v259, %v258
    %v280 = vpack.c.b16 %v261, %v260
    %v281 = vpack.c.b16 %v263, %v262
    %v282 = vpack.c.b16 %v265, %v264
    %v283 = vpack.c.b16 %v267, %v266
    %300 = vmatpush.bf16.msra.mxu0 %v275
    %301 = vmatpush.bf16.msra.mxu0 %v274
    %302 = vmatpush.bf16.msra.mxu0 %v273
    %303 = vmatpush.bf16.msra.mxu0 %v272
    %304 = vmatpush.bf16.msra.mxu0 %v271
    %305 = vmatpush.bf16.msra.mxu0 %v270
    %306 = vmatpush.bf16.msra.mxu0 %v269
    %307 = vmatpush.bf16.msra.mxu0 %v268
    %308 = vmatmul.bf16.gmra.mxu0 %v172
    %v309 = vpop.f32.mrf.mxu0
    %v310 = vadd.f32 %v122, %v309
    %v311 = vpop.f32.mrf.mxu0
    %v312 = vadd.f32 %v122, %v311
    %313 = vmatmul.bf16.gmra.mxu0 %v174
    %v314 = vpop.f32.mrf.mxu0
    %v315 = vadd.f32 %v122, %v314
    %v316 = vpop.f32.mrf.mxu0
    %v317 = vadd.f32 %v122, %v316
    %318 = vmatmul.bf16.gmra.mxu0 %v176
    %v319 = vpop.f32.mrf.mxu0
    %v320 = vadd.f32 %v122, %v319
    %v321 = vpop.f32.mrf.mxu0
    %v322 = vadd.f32 %v122, %v321
    %323 = vmatmul.bf16.gmra.mxu0 %v178
    %v324 = vpop.f32.mrf.mxu0
    %v325 = vadd.f32 %v122, %v324
    %v326 = vpop.f32.mrf.mxu0
    %v327 = vadd.f32 %v122, %v326
    %328 = vmatmul.bf16.gmra.mxu0 %v180
    %v329 = vpop.f32.mrf.mxu0
    %v330 = vadd.f32 %v122, %v329
    %v331 = vpop.f32.mrf.mxu0
    %v332 = vadd.f32 %v122, %v331
    %333 = vmatmul.bf16.gmra.mxu0 %v182
    %v334 = vpop.f32.mrf.mxu0
    %v335 = vadd.f32 %v122, %v334
    %v336 = vpop.f32.mrf.mxu0
    %v337 = vadd.f32 %v122, %v336
    %338 = vmatmul.bf16.gmra.mxu0 %v184
    %v339 = vpop.f32.mrf.mxu0
    %v340 = vadd.f32 %v122, %v339
    %v341 = vpop.f32.mrf.mxu0
    %v342 = vadd.f32 %v122, %v341
    %343 = vmatmul.bf16.gmra.mxu0 %v186
    %v344 = vpop.f32.mrf.mxu0
    %v345 = vadd.f32 %v122, %v344
    %v346 = vpop.f32.mrf.mxu0
    %v347 = vadd.f32 %v122, %v346
    %348 = vdwg.mxu0
    %349 = vmatpush.bf16.msra.mxu0 %v283
    %350 = vmatpush.bf16.msra.mxu0 %v282
    %351 = vmatpush.bf16.msra.mxu0 %v281
    %352 = vmatpush.bf16.msra.mxu0 %v280
    %353 = vmatpush.bf16.msra.mxu0 %v279
    %354 = vmatpush.bf16.msra.mxu0 %v278
    %355 = vmatpush.bf16.msra.mxu0 %v277
    %356 = vmatpush.bf16.msra.mxu0 %v276
    %357 = vmatmul.bf16.gmra.mxu0 %v173
    %v358 = vpop.f32.mrf.mxu0
    %v359 = vadd.f32 %v310, %v358
    %v360 = vpop.f32.mrf.mxu0
    %v361 = vadd.f32 %v312, %v360
    %362 = vmatmul.bf16.gmra.mxu0 %v175
    %v363 = vpop.f32.mrf.mxu0
    %v364 = vadd.f32 %v315, %v363
    %v365 = vpop.f32.mrf.mxu0
    %v366 = vadd.f32 %v317, %v365
    %367 = vmatmul.bf16.gmra.mxu0 %v177
    %v368 = vpop.f32.mrf.mxu0
    %v369 = vadd.f32 %v320, %v368
    %v370 = vpop.f32.mrf.mxu0
    %v371 = vadd.f32 %v322, %v370
    %372 = vmatmul.bf16.gmra.mxu0 %v179
    %v373 = vpop.f32.mrf.mxu0
    %v374 = vadd.f32 %v325, %v373
    %v375 = vpop.f32.mrf.mxu0
    %v376 = vadd.f32 %v327, %v375
    %377 = vmatmul.bf16.gmra.mxu0 %v181
    %v378 = vpop.f32.mrf.mxu0
    %v379 = vadd.f32 %v330, %v378
    %v380 = vpop.f32.mrf.mxu0
    %v381 = vadd.f32 %v332, %v380
    %382 = vmatmul.bf16.gmra.mxu0 %v183
    %v383 = vpop.f32.mrf.mxu0
    %v384 = vadd.f32 %v335, %v383
    %v385 = vpop.f32.mrf.mxu0
    %v386 = vadd.f32 %v337, %v385
    %387 = vmatmul.bf16.gmra.mxu0 %v185
    %v388 = vpop.f32.mrf.mxu0
    %v389 = vadd.f32 %v340, %v388
    %v390 = vpop.f32.mrf.mxu0
    %v391 = vadd.f32 %v342, %v390
    %392 = vmatmul.bf16.gmra.mxu0 %v187
    %v393 = vpop.f32.mrf.mxu0
    %v394 = vadd.f32 %v345, %v393
    %v395 = vpop.f32.mrf.mxu0
    %v396 = vadd.f32 %v347, %v395
    %397 = vdwg.mxu0
    %v398 = vmax.f32 %v359, 0.0
    %v399 = vmax.f32 %v361, 0.0
    %v400 = vmax.f32 %v364, 0.0
    %v401 = vmax.f32 %v366, 0.0
    %v402 = vmax.f32 %v369, 0.0
    %v403 = vmax.f32 %v371, 0.0
    %v404 = vmax.f32 %v374, 0.0
    %v405 = vmax.f32 %v376, 0.0
    %v406 = vmax.f32 %v379, 0.0
    %v407 = vmax.f32 %v381, 0.0
    %v408 = vmax.f32 %v384, 0.0
    %v409 = vmax.f32 %v386, 0.0
    %v410 = vmax.f32 %v389, 0.0
    %v411 = vmax.f32 %v391, 0.0
    %v412 = vmax.f32 %v394, 0.0
    %v413 = vmax.f32 %v396, 0.0
    %v414 = vld [vmem:[%s4] sm:$0xf]
    %v415 = vld [vmem:[%s4 + $0x4] sm:$0xf]
    %v416 = vld [vmem:[%s4 + $0x8] sm:$0xf]
    %v417 = vld [vmem:[%s4 + $0xc] sm:$0xf]
    %v418 = vld [vmem:[%s4 + $0x10] sm:$0xf]
    %v419 = vld [vmem:[%s4 + $0x14] sm:$0xf]
    %v420 = vld [vmem:[%s4 + $0x18] sm:$0xf]
    %v421 = vld [vmem:[%s4 + $0x1c] sm:$0xf]
    %v422 = vld [vmem:[%s4 + $0x20] sm:$0xf]
    %v423 = vld [vmem:[%s4 + $0x24] sm:$0xf]
    %v424 = vld [vmem:[%s4 + $0x28] sm:$0xf]
    %v425 = vld [vmem:[%s4 + $0x2c] sm:$0xf]
    %v426 = vld [vmem:[%s4 + $0x30] sm:$0xf]
    %v427 = vld [vmem:[%s4 + $0x34] sm:$0xf]
    %v428 = vld [vmem:[%s4 + $0x38] sm:$0xf]
    %v429 = vld [vmem:[%s4 + $0x3c] sm:$0xf]
    %v430 = vld [vmem:[#allocation6] sm:$0x1]
    %v431 = vpack.c.bf16 %v399, %v398
    %v432 = vpack.c.bf16 %v401, %v400
    %v433 = vpack.c.bf16 %v403, %v402
    %v434 = vpack.c.bf16 %v405, %v404
    %v435 = vpack.c.bf16 %v407, %v406
    %v436 = vpack.c.bf16 %v409, %v408
    %v437 = vpack.c.bf16 %v411, %v410
    %v438 = vpack.c.bf16 %v413, %v412
    %v440 = vperm.slane %v430, 0
    %v458 = vunpack.c.l.b16 %v414
    %v459 = vunpack.c.l.b16 %v415
    %v460 = vunpack.c.l.b16 %v416
    %v461 = vunpack.c.l.b16 %v417
    %v462 = vunpack.c.l.b16 %v418
    %v463 = vunpack.c.l.b16 %v419
    %v464 = vunpack.c.l.b16 %v420
    %v465 = vunpack.c.l.b16 %v421
    %v466 = vunpack.c.l.b16 %v422
    %v467 = vunpack.c.l.b16 %v423
    %v468 = vunpack.c.l.b16 %v424
    %v469 = vunpack.c.l.b16 %v425
    %v470 = vunpack.c.l.b16 %v426
    %v471 = vunpack.c.l.b16 %v427
    %v472 = vunpack.c.l.b16 %v428
    %v473 = vunpack.c.l.b16 %v429
    %v474 = vpack.c.b16 %v459, %v458
    %v475 = vpack.c.b16 %v461, %v460
    %v476 = vpack.c.b16 %v463, %v462
    %v477 = vpack.c.b16 %v465, %v464
    %v478 = vpack.c.b16 %v467, %v466
    %v479 = vpack.c.b16 %v469, %v468
    %v480 = vpack.c.b16 %v471, %v470
    %v481 = vpack.c.b16 %v473, %v472
    %490 = vmatpush.bf16.msra.mxu0 %v481
    %491 = vmatpush.bf16.msra.mxu0 %v480
    %492 = vmatpush.bf16.msra.mxu0 %v479
    %493 = vmatpush.bf16.msra.mxu0 %v478
    %494 = vmatpush.bf16.msra.mxu0 %v477
    %495 = vmatpush.bf16.msra.mxu0 %v476
    %496 = vmatpush.bf16.msra.mxu0 %v475
    %497 = vmatpush.bf16.msra.mxu0 %v474
    %498 = vmatmul.bf16.gmra.mxu0 %v431
    %v499 = vpop.f32.mrf.mxu0
    %v500 = vadd.f32 %v440, %v499
    %v501 = vpop.f32.mrf.mxu0
    %v502 = vadd.f32 %v440, %v501
    %503 = vmatmul.bf16.gmra.mxu0 %v432
    %v504 = vpop.f32.mrf.mxu0
    %v505 = vadd.f32 %v440, %v504
    %v506 = vpop.f32.mrf.mxu0
    %v507 = vadd.f32 %v440, %v506
    %508 = vmatmul.bf16.gmra.mxu0 %v433
    %v509 = vpop.f32.mrf.mxu0
    %v510 = vadd.f32 %v440, %v509
    %v511 = vpop.f32.mrf.mxu0
    %v512 = vadd.f32 %v440, %v511
    %513 = vmatmul.bf16.gmra.mxu0 %v434
    %v514 = vpop.f32.mrf.mxu0
    %v515 = vadd.f32 %v440, %v514
    %v516 = vpop.f32.mrf.mxu0
    %v517 = vadd.f32 %v440, %v516
    %518 = vmatmul.bf16.gmra.mxu0 %v435
    %v519 = vpop.f32.mrf.mxu0
    %v520 = vadd.f32 %v440, %v519
    %v521 = vpop.f32.mrf.mxu0
    %v522 = vadd.f32 %v440, %v521
    %523 = vmatmul.bf16.gmra.mxu0 %v436
    %v524 = vpop.f32.mrf.mxu0
    %v525 = vadd.f32 %v440, %v524
    %v526 = vpop.f32.mrf.mxu0
    %v527 = vadd.f32 %v440, %v526
    %528 = vmatmul.bf16.gmra.mxu0 %v437
    %v529 = vpop.f32.mrf.mxu0
    %v530 = vadd.f32 %v440, %v529
    %v531 = vpop.f32.mrf.mxu0
    %v532 = vadd.f32 %v440, %v531
    %533 = vmatmul.bf16.gmra.mxu0 %v438
    %v534 = vpop.f32.mrf.mxu0
    %v535 = vadd.f32 %v440, %v534
    %v536 = vpop.f32.mrf.mxu0
    %v537 = vadd.f32 %v440, %v536
    %538 = vdwg.mxu0
    %v539 = vmax.f32 %v500, 0.0
    %v540 = vmax.f32 %v502, 0.0
    %v541 = vmax.f32 %v505, 0.0
    %v542 = vmax.f32 %v507, 0.0
    %v543 = vmax.f32 %v510, 0.0
    %v544 = vmax.f32 %v512, 0.0
    %v545 = vmax.f32 %v515, 0.0
    %v546 = vmax.f32 %v517, 0.0
    %v547 = vmax.f32 %v520, 0.0
    %v548 = vmax.f32 %v522, 0.0
    %v549 = vmax.f32 %v525, 0.0
    %v550 = vmax.f32 %v527, 0.0
    %v551 = vmax.f32 %v530, 0.0
    %v552 = vmax.f32 %v532, 0.0
    %v553 = vmax.f32 %v535, 0.0
    %v554 = vmax.f32 %v537, 0.0
    %v555 = vld [vmem:[%s6] sm:$0xff]
    %v556 = vld [vmem:[%s6 + $0x8] sm:$0xff]
    %v557 = vld [vmem:[%s6 + $0x10] sm:$0xff]
    %v558 = vld [vmem:[%s6 + $0x18] sm:$0xff]
    %v559 = vld [vmem:[%s6 + $0x20] sm:$0xff]
    %v560 = vld [vmem:[%s6 + $0x28] sm:$0xff]
    %v561 = vld [vmem:[%s6 + $0x30] sm:$0xff]
    %v562 = vld [vmem:[%s6 + $0x38] sm:$0xff]
    %v563 = vld [vmem:[%s6 + $0x40] sm:$0xff]
    %v564 = vld [vmem:[%s6 + $0x48] sm:$0xff]
    %v565 = vld [vmem:[%s6 + $0x50] sm:$0xff]
    %v566 = vld [vmem:[%s6 + $0x58] sm:$0xff]
    %v567 = vld [vmem:[%s6 + $0x60] sm:$0xff]
    %v568 = vld [vmem:[%s6 + $0x68] sm:$0xff]
    %v569 = vld [vmem:[%s6 + $0x70] sm:$0xff]
    %v570 = vld [vmem:[%s6 + $0x78] sm:$0xff]
    %v571 = vld [vmem:[%s7] sm:$0x3]
    %v572 = vpack.c.bf16 %v540, %v539
    %v573 = vpack.c.bf16 %v542, %v541
    %v574 = vpack.c.bf16 %v544, %v543
    %v575 = vpack.c.bf16 %v546, %v545
    %v576 = vpack.c.bf16 %v548, %v547
    %v577 = vpack.c.bf16 %v550, %v549
    %v578 = vpack.c.bf16 %v552, %v551
    %v579 = vpack.c.bf16 %v554, %v553
    %v581 = vperm.slane %v571, 0
    %v582 = vperm.slane %v571, 1
    %v601 = vunpack.c.l.b16 %v555
    %v602 = vunpack.c.h.b16 %v555
    %v603 = vunpack.c.l.b16 %v556
    %v604 = vunpack.c.h.b16 %v556
    %v605 = vunpack.c.l.b16 %v557
    %v606 = vunpack.c.h.b16 %v557
    %v607 = vunpack.c.l.b16 %v558
    %v608 = vunpack.c.h.b16 %v558
    %v609 = vunpack.c.l.b16 %v559
    %v610 = vunpack.c.h.b16 %v559
    %v611 = vunpack.c.l.b16 %v560
    %v612 = vunpack.c.h.b16 %v560
    %v613 = vunpack.c.l.b16 %v561
    %v614 = vunpack.c.h.b16 %v561
    %v615 = vunpack.c.l.b16 %v562
    %v616 = vunpack.c.h.b16 %v562
    %v617 = vunpack.c.l.b16 %v563
    %v618 = vunpack.c.h.b16 %v563
    %v619 = vunpack.c.l.b16 %v564
    %v620 = vunpack.c.h.b16 %v564
    %v621 = vunpack.c.l.b16 %v565
    %v622 = vunpack.c.h.b16 %v565
    %v623 = vunpack.c.l.b16 %v566
    %v624 = vunpack.c.h.b16 %v566
    %v625 = vunpack.c.l.b16 %v567
    %v626 = vunpack.c.h.b16 %v567
    %v627 = vunpack.c.l.b16 %v568
    %v628 = vunpack.c.h.b16 %v568
    %v629 = vunpack.c.l.b16 %v569
    %v630 = vunpack.c.h.b16 %v569
    %v631 = vunpack.c.l.b16 %v570
    %v632 = vunpack.c.h.b16 %v570
    %v633 = vpack.c.b16 %v603, %v601
    %v634 = vpack.c.b16 %v604, %v602
    %v635 = vpack.c.b16 %v607, %v605
    %v636 = vpack.c.b16 %v608, %v606
    %v637 = vpack.c.b16 %v611, %v609
    %v638 = vpack.c.b16 %v612, %v610
    %v639 = vpack.c.b16 %v615, %v613
    %v640 = vpack.c.b16 %v616, %v614
    %v641 = vpack.c.b16 %v619, %v617
    %v642 = vpack.c.b16 %v620, %v618
    %v643 = vpack.c.b16 %v623, %v621
    %v644 = vpack.c.b16 %v624, %v622
    %v645 = vpack.c.b16 %v627, %v625
    %v646 = vpack.c.b16 %v628, %v626
    %v647 = vpack.c.b16 %v631, %v629
    %v648 = vpack.c.b16 %v632, %v630
    %665 = vmatpush.bf16.msra.mxu0 %v647
    %666 = vmatpush.bf16.msra.mxu0 %v645
    %667 = vmatpush.bf16.msra.mxu0 %v643
    %668 = vmatpush.bf16.msra.mxu0 %v641
    %669 = vmatpush.bf16.msra.mxu0 %v639
    %670 = vmatpush.bf16.msra.mxu0 %v637
    %671 = vmatpush.bf16.msra.mxu0 %v635
    %672 = vmatpush.bf16.msra.mxu0 %v633
    %673 = vmatmul.bf16.gmra.mxu0 %v572
    %v674 = vpop.f32.mrf.mxu0
    %v675 = vadd.f32 %v581, %v674
    %v676 = vpop.f32.mrf.mxu0
    %v677 = vadd.f32 %v581, %v676
    %678 = vmatmul.bf16.gmra.mxu0 %v573
    %v679 = vpop.f32.mrf.mxu0
    %v680 = vadd.f32 %v581, %v679
    %v681 = vpop.f32.mrf.mxu0
    %v682 = vadd.f32 %v581, %v681
    %683 = vmatmul.bf16.gmra.mxu0 %v574
    %v684 = vpop.f32.mrf.mxu0
    %v685 = vadd.f32 %v581, %v684
    %v686 = vpop.f32.mrf.mxu0
    %v687 = vadd.f32 %v581, %v686
    %688 = vmatmul.bf16.gmra.mxu0 %v575
    %v689 = vpop.f32.mrf.mxu0
    %v690 = vadd.f32 %v581, %v689
    %v691 = vpop.f32.mrf.mxu0
    %v692 = vadd.f32 %v581, %v691
    %693 = vmatmul.bf16.gmra.mxu0 %v576
    %v694 = vpop.f32.mrf.mxu0
    %v695 = vadd.f32 %v581, %v694
    %v696 = vpop.f32.mrf.mxu0
    %v697 = vadd.f32 %v581, %v696
    %698 = vmatmul.bf16.gmra.mxu0 %v577
    %v699 = vpop.f32.mrf.mxu0
    %v700 = vadd.f32 %v581, %v699
    %v701 = vpop.f32.mrf.mxu0
    %v702 = vadd.f32 %v581, %v701
    %703 = vmatmul.bf16.gmra.mxu0 %v578
    %v704 = vpop.f32.mrf.mxu0
    %v705 = vadd.f32 %v581, %v704
    %v706 = vpop.f32.mrf.mxu0
    %v707 = vadd.f32 %v581, %v706
    %708 = vmatmul.bf16.gmra.mxu0 %v579
    %v709 = vpop.f32.mrf.mxu0
    %v710 = vadd.f32 %v581, %v709
    %v711 = vpop.f32.mrf.mxu0
    %v712 = vadd.f32 %v581, %v711
    %713 = vdwg.mxu0
    %714 = vmatpush.bf16.msra.mxu0 %v648
    %715 = vmatpush.bf16.msra.mxu0 %v646
    %716 = vmatpush.bf16.msra.mxu0 %v644
    %717 = vmatpush.bf16.msra.mxu0 %v642
    %718 = vmatpush.bf16.msra.mxu0 %v640
    %719 = vmatpush.bf16.msra.mxu0 %v638
    %720 = vmatpush.bf16.msra.mxu0 %v636
    %721 = vmatpush.bf16.msra.mxu0 %v634
    %722 = vmatmul.bf16.gmra.mxu0 %v572
    %v723 = vpop.f32.mrf.mxu0
    %v724 = vadd.f32 %v582, %v723
    %v725 = vpop.f32.mrf.mxu0
    %v726 = vadd.f32 %v582, %v725
    %727 = vmatmul.bf16.gmra.mxu0 %v573
    %v728 = vpop.f32.mrf.mxu0
    %v729 = vadd.f32 %v582, %v728
    %v730 = vpop.f32.mrf.mxu0
    %v731 = vadd.f32 %v582, %v730
    %732 = vmatmul.bf16.gmra.mxu0 %v574
    %v733 = vpop.f32.mrf.mxu0
    %v734 = vadd.f32 %v582, %v733
    %v735 = vpop.f32.mrf.mxu0
    %v736 = vadd.f32 %v582, %v735
    %737 = vmatmul.bf16.gmra.mxu0 %v575
    %v738 = vpop.f32.mrf.mxu0
    %v739 = vadd.f32 %v582, %v738
    %v740 = vpop.f32.mrf.mxu0
    %v741 = vadd.f32 %v582, %v740
    %742 = vmatmul.bf16.gmra.mxu0 %v576
    %v743 = vpop.f32.mrf.mxu0
    %v744 = vadd.f32 %v582, %v743
    %v745 = vpop.f32.mrf.mxu0
    %v746 = vadd.f32 %v582, %v745
    %747 = vmatmul.bf16.gmra.mxu0 %v577
    %v748 = vpop.f32.mrf.mxu0
    %v749 = vadd.f32 %v582, %v748
    %v750 = vpop.f32.mrf.mxu0
    %v751 = vadd.f32 %v582, %v750
    %752 = vmatmul.bf16.gmra.mxu0 %v578
    %v753 = vpop.f32.mrf.mxu0
    %v754 = vadd.f32 %v582, %v753
    %v755 = vpop.f32.mrf.mxu0
    %v756 = vadd.f32 %v582, %v755
    %757 = vmatmul.bf16.gmra.mxu0 %v579
    %v758 = vpop.f32.mrf.mxu0
    %v759 = vadd.f32 %v582, %v758
    %v760 = vpop.f32.mrf.mxu0
    %v761 = vadd.f32 %v582, %v760
    %762 = vdwg.mxu0
    %763 = vst [vmem:[#allocation2] sm:$0xff] 0.0
    %764 = vst [vmem:[#allocation2 + $0x8] sm:$0xff] 0.0
    %765 = vst [vmem:[#allocation2 + $0x10] sm:$0xff] 0.0
    %766 = vst [vmem:[#allocation2 + $0x18] sm:$0xff] 0.0
    %767 = vst [vmem:[#allocation2 + $0x20] sm:$0xff] 0.0
    %768 = vst [vmem:[#allocation2 + $0x28] sm:$0xff] 0.0
    %769 = vst [vmem:[#allocation2 + $0x30] sm:$0xff] 0.0
    %770 = vst [vmem:[#allocation2 + $0x38] sm:$0xff] 0.0
    %771 = vst [vmem:[#allocation2 + $0x40] sm:$0xff] 0.0
    %772 = vst [vmem:[#allocation2 + $0x48] sm:$0xff] 0.0
    %773 = vst [vmem:[#allocation2 + $0x50] sm:$0xff] 0.0
    %774 = vst [vmem:[#allocation2 + $0x58] sm:$0xff] 0.0
    %775 = vst [vmem:[#allocation2 + $0x60] sm:$0xff] 0.0
    %776 = vst [vmem:[#allocation2 + $0x68] sm:$0xff] 0.0
    %777 = vst [vmem:[#allocation2 + $0x70] sm:$0xff] 0.0
    %778 = vst [vmem:[#allocation2 + $0x78] sm:$0xff] 0.0
    %v779 = vld [vmem:[%s1] sm:$0xff]
    %v780 = vld [vmem:[%s1 + $0x8] sm:$0xff]
    %v781 = vld [vmem:[%s1 + $0x10] sm:$0xff]
    %v782 = vld [vmem:[%s1 + $0x18] sm:$0xff]
    %v783 = vld [vmem:[%s1 + $0x20] sm:$0xff]
    %v784 = vld [vmem:[%s1 + $0x28] sm:$0xff]
    %v785 = vld [vmem:[%s1 + $0x30] sm:$0xff]
    %v786 = vld [vmem:[%s1 + $0x38] sm:$0xff]
    %v787 = vld [vmem:[%s1 + $0x40] sm:$0xff]
    %v788 = vld [vmem:[%s1 + $0x48] sm:$0xff]
    %v789 = vld [vmem:[%s1 + $0x50] sm:$0xff]
    %v790 = vld [vmem:[%s1 + $0x58] sm:$0xff]
    %v791 = vld [vmem:[%s1 + $0x60] sm:$0xff]
    %v792 = vld [vmem:[%s1 + $0x68] sm:$0xff]
    %v793 = vld [vmem:[%s1 + $0x70] sm:$0xff]
    %v794 = vld [vmem:[%s1 + $0x78] sm:$0xff]
    %vm795 = vcmask 130048
    %796 = vst.msk [vmem:[#allocation2] sm:$0xff] %vm795, %v779
    %797 = vst.msk [vmem:[#allocation2 + $0x8] sm:$0xff] %vm795, %v780
    %798 = vst.msk [vmem:[#allocation2 + $0x10] sm:$0xff] %vm795, %v781
    %799 = vst.msk [vmem:[#allocation2 + $0x18] sm:$0xff] %vm795, %v782
    %800 = vst.msk [vmem:[#allocation2 + $0x20] sm:$0xff] %vm795, %v783
    %801 = vst.msk [vmem:[#allocation2 + $0x28] sm:$0xff] %vm795, %v784
    %802 = vst.msk [vmem:[#allocation2 + $0x30] sm:$0xff] %vm795, %v785
    %803 = vst.msk [vmem:[#allocation2 + $0x38] sm:$0xff] %vm795, %v786
    %804 = vst.msk [vmem:[#allocation2 + $0x40] sm:$0xff] %vm795, %v787
    %805 = vst.msk [vmem:[#allocation2 + $0x48] sm:$0xff] %vm795, %v788
    %806 = vst.msk [vmem:[#allocation2 + $0x50] sm:$0xff] %vm795, %v789
    %807 = vst.msk [vmem:[#allocation2 + $0x58] sm:$0xff] %vm795, %v790
    %808 = vst.msk [vmem:[#allocation2 + $0x60] sm:$0xff] %vm795, %v791
    %809 = vst.msk [vmem:[#allocation2 + $0x68] sm:$0xff] %vm795, %v792
    %810 = vst.msk [vmem:[#allocation2 + $0x70] sm:$0xff] %vm795, %v793
    %811 = vst.msk [vmem:[#allocation2 + $0x78] sm:$0xff] %vm795, %v794
    %v812 = vmul.f32 %v724, 0.5
    %v813 = vmul.f32 %v726, 0.5
    %v814 = vmul.f32 %v729, 0.5
    %v815 = vmul.f32 %v731, 0.5
    %v816 = vmul.f32 %v734, 0.5
    %v817 = vmul.f32 %v736, 0.5
    %v818 = vmul.f32 %v739, 0.5
    %v819 = vmul.f32 %v741, 0.5
    %v820 = vmul.f32 %v744, 0.5
    %v821 = vmul.f32 %v746, 0.5
    %v822 = vmul.f32 %v749, 0.5
    %v823 = vmul.f32 %v751, 0.5
    %v824 = vmul.f32 %v754, 0.5
    %v825 = vmul.f32 %v756, 0.5
    %v826 = vmul.f32 %v759, 0.5
    %v827 = vmul.f32 %v761, 0.5
    %v828 = vmul.f32 %v812, 1.442695
    %v829 = vpow.pop %v828
    %v830 = vmul.f32 %v813, 1.442695
    %v831 = vpow.pop %v830
    %v832 = vmul.f32 %v814, 1.442695
    %v833 = vpow.pop %v832
    %v834 = vmul.f32 %v815, 1.442695
    %v835 = vpow.pop %v834
    %v836 = vmul.f32 %v816, 1.442695
    %v837 = vpow.pop %v836
    %v838 = vmul.f32 %v817, 1.442695
    %v839 = vpow.pop %v838
    %v840 = vmul.f32 %v818, 1.442695
    %v841 = vpow.pop %v840
    %v842 = vmul.f32 %v819, 1.442695
    %v843 = vpow.pop %v842
    %v844 = vmul.f32 %v820, 1.442695
    %v845 = vpow.pop %v844
    %v846 = vmul.f32 %v821, 1.442695
    %v847 = vpow.pop %v846
    %v848 = vmul.f32 %v822, 1.442695
    %v849 = vpow.pop %v848
    %v850 = vmul.f32 %v823, 1.442695
    %v851 = vpow.pop %v850
    %v852 = vmul.f32 %v824, 1.442695
    %v853 = vpow.pop %v852
    %v854 = vmul.f32 %v825, 1.442695
    %v855 = vpow.pop %v854
    %v856 = vmul.f32 %v826, 1.442695
    %v857 = vpow.pop %v856
    %v858 = vmul.f32 %v827, 1.442695
    %v859 = vpow.pop %v858
    %v860 = vld [vmem:[#allocation2] sm:$0xff]
    %v861 = vld [vmem:[#allocation2 + $0x8] sm:$0xff]
    %v862 = vld [vmem:[#allocation2 + $0x10] sm:$0xff]
    %v863 = vld [vmem:[#allocation2 + $0x18] sm:$0xff]
    %v864 = vld [vmem:[#allocation2 + $0x20] sm:$0xff]
    %v865 = vld [vmem:[#allocation2 + $0x28] sm:$0xff]
    %v866 = vld [vmem:[#allocation2 + $0x30] sm:$0xff]
    %v867 = vld [vmem:[#allocation2 + $0x38] sm:$0xff]
    %v868 = vld [vmem:[#allocation2 + $0x40] sm:$0xff]
    %v869 = vld [vmem:[#allocation2 + $0x48] sm:$0xff]
    %v870 = vld [vmem:[#allocation2 + $0x50] sm:$0xff]
    %v871 = vld [vmem:[#allocation2 + $0x58] sm:$0xff]
    %v872 = vld [vmem:[#allocation2 + $0x60] sm:$0xff]
    %v873 = vld [vmem:[#allocation2 + $0x68] sm:$0xff]
    %v874 = vld [vmem:[#allocation2 + $0x70] sm:$0xff]
    %v875 = vld [vmem:[#allocation2 + $0x78] sm:$0xff]
    %v876 = vmul.f32 %v829, %v860
    %v877 = vmul.f32 %v831, %v861
    %v878 = vmul.f32 %v833, %v862
    %v879 = vmul.f32 %v835, %v863
    %v880 = vmul.f32 %v837, %v864
    %v881 = vmul.f32 %v839, %v865
    %v882 = vmul.f32 %v841, %v866
    %v883 = vmul.f32 %v843, %v867
    %v884 = vmul.f32 %v845, %v868
    %v885 = vmul.f32 %v847, %v869
    %v886 = vmul.f32 %v849, %v870
    %v887 = vmul.f32 %v851, %v871
    %v888 = vmul.f32 %v853, %v872
    %v889 = vmul.f32 %v855, %v873
    %v890 = vmul.f32 %v857, %v874
    %v891 = vmul.f32 %v859, %v875
    %v892 = vadd.f32 %v675, %v876
    %v893 = vadd.f32 %v677, %v877
    %v894 = vadd.f32 %v680, %v878
    %v895 = vadd.f32 %v682, %v879
    %v896 = vadd.f32 %v685, %v880
    %v897 = vadd.f32 %v687, %v881
    %v898 = vadd.f32 %v690, %v882
    %v899 = vadd.f32 %v692, %v883
    %v900 = vadd.f32 %v695, %v884
    %v901 = vadd.f32 %v697, %v885
    %v902 = vadd.f32 %v700, %v886
    %v903 = vadd.f32 %v702, %v887
    %v904 = vadd.f32 %v705, %v888
    %v905 = vadd.f32 %v707, %v889
    %v906 = vadd.f32 %v710, %v890
    %v907 = vadd.f32 %v712, %v891
    %v908 = vld [vmem:[%s8] sm:$0xf]
    %v909 = vld [vmem:[%s8 + $0x4] sm:$0xf]
    %v910 = vld [vmem:[%s8 + $0x8] sm:$0xf]
    %v911 = vld [vmem:[%s8 + $0xc] sm:$0xf]
    %v912 = vld [vmem:[%s8 + $0x10] sm:$0xf]
    %v913 = vld [vmem:[%s8 + $0x14] sm:$0xf]
    %v914 = vld [vmem:[%s8 + $0x18] sm:$0xf]
    %v915 = vld [vmem:[%s8 + $0x1c] sm:$0xf]
    %v916 = vld [vmem:[%s8 + $0x20] sm:$0xf]
    %v917 = vld [vmem:[%s8 + $0x24] sm:$0xf]
    %v918 = vld [vmem:[%s8 + $0x28] sm:$0xf]
    %v919 = vld [vmem:[%s8 + $0x2c] sm:$0xf]
    %v920 = vld [vmem:[%s8 + $0x30] sm:$0xf]
    %v921 = vld [vmem:[%s8 + $0x34] sm:$0xf]
    %v922 = vld [vmem:[%s8 + $0x38] sm:$0xf]
    %v923 = vld [vmem:[%s8 + $0x3c] sm:$0xf]
    %v924 = vld [vmem:[%s9] sm:$0x1]
    %v925 = vpack.c.bf16 %v893, %v892
    %v926 = vpack.c.bf16 %v895, %v894
    %v927 = vpack.c.bf16 %v897, %v896
    %v928 = vpack.c.bf16 %v899, %v898
    %v929 = vpack.c.bf16 %v901, %v900
    %v930 = vpack.c.bf16 %v903, %v902
    %v931 = vpack.c.bf16 %v905, %v904
    %v932 = vpack.c.bf16 %v907, %v906
    %v934 = vperm.slane %v924, 0
    %v952 = vunpack.c.l.b16 %v908
    %v953 = vunpack.c.l.b16 %v909
    %v954 = vunpack.c.l.b16 %v910
    %v955 = vunpack.c.l.b16 %v911
    %v956 = vunpack.c.l.b16 %v912
    %v957 = vunpack.c.l.b16 %v913
    %v958 = vunpack.c.l.b16 %v914
    %v959 = vunpack.c.l.b16 %v915
    %v960 = vunpack.c.l.b16 %v916
    %v961 = vunpack.c.l.b16 %v917
    %v962 = vunpack.c.l.b16 %v918
    %v963 = vunpack.c.l.b16 %v919
    %v964 = vunpack.c.l.b16 %v920
    %v965 = vunpack.c.l.b16 %v921
    %v966 = vunpack.c.l.b16 %v922
    %v967 = vunpack.c.l.b16 %v923
    %v968 = vpack.c.b16 %v953, %v952
    %v969 = vpack.c.b16 %v955, %v954
    %v970 = vpack.c.b16 %v957, %v956
    %v971 = vpack.c.b16 %v959, %v958
    %v972 = vpack.c.b16 %v961, %v960
    %v973 = vpack.c.b16 %v963, %v962
    %v974 = vpack.c.b16 %v965, %v964
    %v975 = vpack.c.b16 %v967, %v966
    %984 = vmatpush.bf16.msra.mxu0 %v975
    %985 = vmatpush.bf16.msra.mxu0 %v974
    %986 = vmatpush.bf16.msra.mxu0 %v973
    %987 = vmatpush.bf16.msra.mxu0 %v972
    %988 = vmatpush.bf16.msra.mxu0 %v971
    %989 = vmatpush.bf16.msra.mxu0 %v970
    %990 = vmatpush.bf16.msra.mxu0 %v969
    %991 = vmatpush.bf16.msra.mxu0 %v968
    %992 = vmatmul.bf16.gmra.mxu0 %v925
    %v993 = vpop.f32.mrf.mxu0
    %v994 = vadd.f32 %v934, %v993
    %v995 = vpop.f32.mrf.mxu0
    %v996 = vadd.f32 %v934, %v995
    %997 = vmatmul.bf16.gmra.mxu0 %v926
    %v998 = vpop.f32.mrf.mxu0
    %v999 = vadd.f32 %v934, %v998
    %v1000 = vpop.f32.mrf.mxu0
    %v1001 = vadd.f32 %v934, %v1000
    %1002 = vmatmul.bf16.gmra.mxu0 %v927
    %v1003 = vpop.f32.mrf.mxu0
    %v1004 = vadd.f32 %v934, %v1003
    %v1005 = vpop.f32.mrf.mxu0
    %v1006 = vadd.f32 %v934, %v1005
    %1007 = vmatmul.bf16.gmra.mxu0 %v928
    %v1008 = vpop.f32.mrf.mxu0
    %v1009 = vadd.f32 %v934, %v1008
    %v1010 = vpop.f32.mrf.mxu0
    %v1011 = vadd.f32 %v934, %v1010
    %1012 = vmatmul.bf16.gmra.mxu0 %v929
    %v1013 = vpop.f32.mrf.mxu0
    %v1014 = vadd.f32 %v934, %v1013
    %v1015 = vpop.f32.mrf.mxu0
    %v1016 = vadd.f32 %v934, %v1015
    %1017 = vmatmul.bf16.gmra.mxu0 %v930
    %v1018 = vpop.f32.mrf.mxu0
    %v1019 = vadd.f32 %v934, %v1018
    %v1020 = vpop.f32.mrf.mxu0
    %v1021 = vadd.f32 %v934, %v1020
    %1022 = vmatmul.bf16.gmra.mxu0 %v931
    %v1023 = vpop.f32.mrf.mxu0
    %v1024 = vadd.f32 %v934, %v1023
    %v1025 = vpop.f32.mrf.mxu0
    %v1026 = vadd.f32 %v934, %v1025
    %1027 = vmatmul.bf16.gmra.mxu0 %v932
    %v1028 = vpop.f32.mrf.mxu0
    %v1029 = vadd.f32 %v934, %v1028
    %v1030 = vpop.f32.mrf.mxu0
    %v1031 = vadd.f32 %v934, %v1030
    %1032 = vdwg.mxu0
    %v1033 = vmax.f32 %v994, 0.0
    %v1034 = vmax.f32 %v996, 0.0
    %v1035 = vmax.f32 %v999, 0.0
    %v1036 = vmax.f32 %v1001, 0.0
    %v1037 = vmax.f32 %v1004, 0.0
    %v1038 = vmax.f32 %v1006, 0.0
    %v1039 = vmax.f32 %v1009, 0.0
    %v1040 = vmax.f32 %v1011, 0.0
    %v1041 = vmax.f32 %v1014, 0.0
    %v1042 = vmax.f32 %v1016, 0.0
    %v1043 = vmax.f32 %v1019, 0.0
    %v1044 = vmax.f32 %v1021, 0.0
    %v1045 = vmax.f32 %v1024, 0.0
    %v1046 = vmax.f32 %v1026, 0.0
    %v1047 = vmax.f32 %v1029, 0.0
    %v1048 = vmax.f32 %v1031, 0.0
    %v1049 = vld [vmem:[%s10] sm:$0xff]
    %v1050 = vld [vmem:[%s10 + $0x8] sm:$0xff]
    %v1051 = vld [vmem:[%s10 + $0x10] sm:$0xff]
    %v1052 = vld [vmem:[%s10 + $0x18] sm:$0xff]
    %v1053 = vld [vmem:[%s10 + $0x20] sm:$0xff]
    %v1054 = vld [vmem:[%s10 + $0x28] sm:$0xff]
    %v1055 = vld [vmem:[%s10 + $0x30] sm:$0xff]
    %v1056 = vld [vmem:[%s10 + $0x38] sm:$0xff]
    %v1057 = vld [vmem:[%s10 + $0x40] sm:$0xff]
    %v1058 = vld [vmem:[%s10 + $0x48] sm:$0xff]
    %v1059 = vld [vmem:[%s10 + $0x50] sm:$0xff]
    %v1060 = vld [vmem:[%s10 + $0x58] sm:$0xff]
    %v1061 = vld [vmem:[%s10 + $0x60] sm:$0xff]
    %v1062 = vld [vmem:[%s10 + $0x68] sm:$0xff]
    %v1063 = vld [vmem:[%s10 + $0x70] sm:$0xff]
    %v1064 = vld [vmem:[%s10 + $0x78] sm:$0xff]
    %v1065 = vld [vmem:[%s11] sm:$0x3]
    %v1066 = vpack.c.bf16 %v1034, %v1033
    %v1067 = vpack.c.bf16 %v1036, %v1035
    %v1068 = vpack.c.bf16 %v1038, %v1037
    %v1069 = vpack.c.bf16 %v1040, %v1039
    %v1070 = vpack.c.bf16 %v1042, %v1041
    %v1071 = vpack.c.bf16 %v1044, %v1043
    %v1072 = vpack.c.bf16 %v1046, %v1045
    %v1073 = vpack.c.bf16 %v1048, %v1047
    %v1075 = vperm.slane %v1065, 0
    %v1076 = vperm.slane %v1065, 1
    %v1095 = vunpack.c.l.b16 %v1049
    %v1096 = vunpack.c.h.b16 %v1049
    %v1097 = vunpack.c.l.b16 %v1050
    %v1098 = vunpack.c.h.b16 %v1050
    %v1099 = vunpack.c.l.b16 %v1051
    %v1100 = vunpack.c.h.b16 %v1051
    %v1101 = vunpack.c.l.b16 %v1052
    %v1102 = vunpack.c.h.b16 %v1052
    %v1103 = vunpack.c.l.b16 %v1053
    %v1104 = vunpack.c.h.b16 %v1053
    %v1105 = vunpack.c.l.b16 %v1054
    %v1106 = vunpack.c.h.b16 %v1054
    %v1107 = vunpack.c.l.b16 %v1055
    %v1108 = vunpack.c.h.b16 %v1055
    %v1109 = vunpack.c.l.b16 %v1056
    %v1110 = vunpack.c.h.b16 %v1056
    %v1111 = vunpack.c.l.b16 %v1057
    %v1112 = vunpack.c.h.b16 %v1057
    %v1113 = vunpack.c.l.b16 %v1058
    %v1114 = vunpack.c.h.b16 %v1058
    %v1115 = vunpack.c.l.b16 %v1059
    %v1116 = vunpack.c.h.b16 %v1059
    %v1117 = vunpack.c.l.b16 %v1060
    %v1118 = vunpack.c.h.b16 %v1060
    %v1119 = vunpack.c.l.b16 %v1061
    %v1120 = vunpack.c.h.b16 %v1061
    %v1121 = vunpack.c.l.b16 %v1062
    %v1122 = vunpack.c.h.b16 %v1062
    %v1123 = vunpack.c.l.b16 %v1063
    %v1124 = vunpack.c.h.b16 %v1063
    %v1125 = vunpack.c.l.b16 %v1064
    %v1126 = vunpack.c.h.b16 %v1064
    %v1127 = vpack.c.b16 %v1097, %v1095
    %v1128 = vpack.c.b16 %v1098, %v1096
    %v1129 = vpack.c.b16 %v1101, %v1099
    %v1130 = vpack.c.b16 %v1102, %v1100
    %v1131 = vpack.c.b16 %v1105, %v1103
    %v1132 = vpack.c.b16 %v1106, %v1104
    %v1133 = vpack.c.b16 %v1109, %v1107
    %v1134 = vpack.c.b16 %v1110, %v1108
    %v1135 = vpack.c.b16 %v1113, %v1111
    %v1136 = vpack.c.b16 %v1114, %v1112
    %v1137 = vpack.c.b16 %v1117, %v1115
    %v1138 = vpack.c.b16 %v1118, %v1116
    %v1139 = vpack.c.b16 %v1121, %v1119
    %v1140 = vpack.c.b16 %v1122, %v1120
    %v1141 = vpack.c.b16 %v1125, %v1123
    %v1142 = vpack.c.b16 %v1126, %v1124
    %1159 = vmatpush.bf16.msra.mxu0 %v1141
    %1160 = vmatpush.bf16.msra.mxu0 %v1139
    %1161 = vmatpush.bf16.msra.mxu0 %v1137
    %1162 = vmatpush.bf16.msra.mxu0 %v1135
    %1163 = vmatpush.bf16.msra.mxu0 %v1133
    %1164 = vmatpush.bf16.msra.mxu0 %v1131
    %1165 = vmatpush.bf16.msra.mxu0 %v1129
    %1166 = vmatpush.bf16.msra.mxu0 %v1127
    %1167 = vmatmul.bf16.gmra.mxu0 %v1066
    %v1168 = vpop.f32.mrf.mxu0
    %v1169 = vadd.f32 %v1075, %v1168
    %v1170 = vpop.f32.mrf.mxu0
    %v1171 = vadd.f32 %v1075, %v1170
    %1172 = vmatmul.bf16.gmra.mxu0 %v1067
    %v1173 = vpop.f32.mrf.mxu0
    %v1174 = vadd.f32 %v1075, %v1173
    %v1175 = vpop.f32.mrf.mxu0
    %v1176 = vadd.f32 %v1075, %v1175
    %1177 = vmatmul.bf16.gmra.mxu0 %v1068
    %v1178 = vpop.f32.mrf.mxu0
    %v1179 = vadd.f32 %v1075, %v1178
    %v1180 = vpop.f32.mrf.mxu0
    %v1181 = vadd.f32 %v1075, %v1180
    %1182 = vmatmul.bf16.gmra.mxu0 %v1069
    %v1183 = vpop.f32.mrf.mxu0
    %v1184 = vadd.f32 %v1075, %v1183
    %v1185 = vpop.f32.mrf.mxu0
    %v1186 = vadd.f32 %v1075, %v1185
    %1187 = vmatmul.bf16.gmra.mxu0 %v1070
    %v1188 = vpop.f32.mrf.mxu0
    %v1189 = vadd.f32 %v1075, %v1188
    %v1190 = vpop.f32.mrf.mxu0
    %v1191 = vadd.f32 %v1075, %v1190
    %1192 = vmatmul.bf16.gmra.mxu0 %v1071
    %v1193 = vpop.f32.mrf.mxu0
    %v1194 = vadd.f32 %v1075, %v1193
    %v1195 = vpop.f32.mrf.mxu0
    %v1196 = vadd.f32 %v1075, %v1195
    %1197 = vmatmul.bf16.gmra.mxu0 %v1072
    %v1198 = vpop.f32.mrf.mxu0
    %v1199 = vadd.f32 %v1075, %v1198
    %v1200 = vpop.f32.mrf.mxu0
    %v1201 = vadd.f32 %v1075, %v1200
    %1202 = vmatmul.bf16.gmra.mxu0 %v1073
    %v1203 = vpop.f32.mrf.mxu0
    %v1204 = vadd.f32 %v1075, %v1203
    %v1205 = vpop.f32.mrf.mxu0
    %v1206 = vadd.f32 %v1075, %v1205
    %1207 = vdwg.mxu0
    %1208 = vmatpush.bf16.msra.mxu0 %v1142
    %1209 = vmatpush.bf16.msra.mxu0 %v1140
    %1210 = vmatpush.bf16.msra.mxu0 %v1138
    %1211 = vmatpush.bf16.msra.mxu0 %v1136
    %1212 = vmatpush.bf16.msra.mxu0 %v1134
    %1213 = vmatpush.bf16.msra.mxu0 %v1132
    %1214 = vmatpush.bf16.msra.mxu0 %v1130
    %1215 = vmatpush.bf16.msra.mxu0 %v1128
    %1216 = vmatmul.bf16.gmra.mxu0 %v1066
    %v1217 = vpop.f32.mrf.mxu0
    %v1218 = vadd.f32 %v1076, %v1217
    %v1219 = vpop.f32.mrf.mxu0
    %v1220 = vadd.f32 %v1076, %v1219
    %1221 = vmatmul.bf16.gmra.mxu0 %v1067
    %v1222 = vpop.f32.mrf.mxu0
    %v1223 = vadd.f32 %v1076, %v1222
    %v1224 = vpop.f32.mrf.mxu0
    %v1225 = vadd.f32 %v1076, %v1224
    %1226 = vmatmul.bf16.gmra.mxu0 %v1068
    %v1227 = vpop.f32.mrf.mxu0
    %v1228 = vadd.f32 %v1076, %v1227
    %v1229 = vpop.f32.mrf.mxu0
    %v1230 = vadd.f32 %v1076, %v1229
    %1231 = vmatmul.bf16.gmra.mxu0 %v1069
    %v1232 = vpop.f32.mrf.mxu0
    %v1233 = vadd.f32 %v1076, %v1232
    %v1234 = vpop.f32.mrf.mxu0
    %v1235 = vadd.f32 %v1076, %v1234
    %1236 = vmatmul.bf16.gmra.mxu0 %v1070
    %v1237 = vpop.f32.mrf.mxu0
    %v1238 = vadd.f32 %v1076, %v1237
    %v1239 = vpop.f32.mrf.mxu0
    %v1240 = vadd.f32 %v1076, %v1239
    %1241 = vmatmul.bf16.gmra.mxu0 %v1071
    %v1242 = vpop.f32.mrf.mxu0
    %v1243 = vadd.f32 %v1076, %v1242
    %v1244 = vpop.f32.mrf.mxu0
    %v1245 = vadd.f32 %v1076, %v1244
    %1246 = vmatmul.bf16.gmra.mxu0 %v1072
    %v1247 = vpop.f32.mrf.mxu0
    %v1248 = vadd.f32 %v1076, %v1247
    %v1249 = vpop.f32.mrf.mxu0
    %v1250 = vadd.f32 %v1076, %v1249
    %1251 = vmatmul.bf16.gmra.mxu0 %v1073
    %v1252 = vpop.f32.mrf.mxu0
    %v1253 = vadd.f32 %v1076, %v1252
    %v1254 = vpop.f32.mrf.mxu0
    %v1255 = vadd.f32 %v1076, %v1254
    %1256 = vdwg.mxu0
    %v1257 = vsub.f32 0.0, %v1169
    %v1258 = vsub.f32 0.0, %v1218
    %v1259 = vsub.f32 0.0, %v1171
    %v1260 = vsub.f32 0.0, %v1220
    %v1261 = vsub.f32 0.0, %v1174
    %v1262 = vsub.f32 0.0, %v1223
    %v1263 = vsub.f32 0.0, %v1176
    %v1264 = vsub.f32 0.0, %v1225
    %v1265 = vsub.f32 0.0, %v1179
    %v1266 = vsub.f32 0.0, %v1228
    %v1267 = vsub.f32 0.0, %v1181
    %v1268 = vsub.f32 0.0, %v1230
    %v1269 = vsub.f32 0.0, %v1184
    %v1270 = vsub.f32 0.0, %v1233
    %v1271 = vsub.f32 0.0, %v1186
    %v1272 = vsub.f32 0.0, %v1235
    %v1273 = vsub.f32 0.0, %v1189
    %v1274 = vsub.f32 0.0, %v1238
    %v1275 = vsub.f32 0.0, %v1191
    %v1276 = vsub.f32 0.0, %v1240
    %v1277 = vsub.f32 0.0, %v1194
    %v1278 = vsub.f32 0.0, %v1243
    %v1279 = vsub.f32 0.0, %v1196
    %v1280 = vsub.f32 0.0, %v1245
    %v1281 = vsub.f32 0.0, %v1199
    %v1282 = vsub.f32 0.0, %v1248
    %v1283 = vsub.f32 0.0, %v1201
    %v1284 = vsub.f32 0.0, %v1250
    %v1285 = vsub.f32 0.0, %v1204
    %v1286 = vsub.f32 0.0, %v1253
    %v1287 = vsub.f32 0.0, %v1206
    %v1288 = vsub.f32 0.0, %v1255
    %v1289 = vmul.f32 %v1257, 1.442695
    %v1290 = vpow.pop %v1289
    %v1291 = vmul.f32 %v1258, 1.442695
    %v1292 = vpow.pop %v1291
    %v1293 = vmul.f32 %v1259, 1.442695
    %v1294 = vpow.pop %v1293
    %v1295 = vmul.f32 %v1260, 1.442695
    %v1296 = vpow.pop %v1295
    %v1297 = vmul.f32 %v1261, 1.442695
    %v1298 = vpow.pop %v1297
    %v1299 = vmul.f32 %v1262, 1.442695
    %v1300 = vpow.pop %v1299
    %v1301 = vmul.f32 %v1263, 1.442695
    %v1302 = vpow.pop %v1301
    %v1303 = vmul.f32 %v1264, 1.442695
    %v1304 = vpow.pop %v1303
    %v1305 = vmul.f32 %v1265, 1.442695
    %v1306 = vpow.pop %v1305
    %v1307 = vmul.f32 %v1266, 1.442695
    %v1308 = vpow.pop %v1307
    %v1309 = vmul.f32 %v1267, 1.442695
    %v1310 = vpow.pop %v1309
    %v1311 = vmul.f32 %v1268, 1.442695
    %v1312 = vpow.pop %v1311
    %v1313 = vmul.f32 %v1269, 1.442695
    %v1314 = vpow.pop %v1313
    %v1315 = vmul.f32 %v1270, 1.442695
    %v1316 = vpow.pop %v1315
    %v1317 = vmul.f32 %v1271, 1.442695
    %v1318 = vpow.pop %v1317
    %v1319 = vmul.f32 %v1272, 1.442695
    %v1320 = vpow.pop %v1319
    %v1321 = vmul.f32 %v1273, 1.442695
    %v1322 = vpow.pop %v1321
    %v1323 = vmul.f32 %v1274, 1.442695
    %v1324 = vpow.pop %v1323
    %v1325 = vmul.f32 %v1275, 1.442695
    %v1326 = vpow.pop %v1325
    %v1327 = vmul.f32 %v1276, 1.442695
    %v1328 = vpow.pop %v1327
    %v1329 = vmul.f32 %v1277, 1.442695
    %v1330 = vpow.pop %v1329
    %v1331 = vmul.f32 %v1278, 1.442695
    %v1332 = vpow.pop %v1331
    %v1333 = vmul.f32 %v1279, 1.442695
    %v1334 = vpow.pop %v1333
    %v1335 = vmul.f32 %v1280, 1.442695
    %v1336 = vpow.pop %v1335
    %v1337 = vmul.f32 %v1281, 1.442695
    %v1338 = vpow.pop %v1337
    %v1339 = vmul.f32 %v1282, 1.442695
    %v1340 = vpow.pop %v1339
    %v1341 = vmul.f32 %v1283, 1.442695
    %v1342 = vpow.pop %v1341
    %v1343 = vmul.f32 %v1284, 1.442695
    %v1344 = vpow.pop %v1343
    %v1345 = vmul.f32 %v1285, 1.442695
    %v1346 = vpow.pop %v1345
    %v1347 = vmul.f32 %v1286, 1.442695
    %v1348 = vpow.pop %v1347
    %v1349 = vmul.f32 %v1287, 1.442695
    %v1350 = vpow.pop %v1349
    %v1351 = vmul.f32 %v1288, 1.442695
    %v1352 = vpow.pop %v1351
    %v1353 = vadd.f32 %v1290, 1.0
    %v1354 = vadd.f32 %v1292, 1.0
    %v1355 = vadd.f32 %v1294, 1.0
    %v1356 = vadd.f32 %v1296, 1.0
    %v1357 = vadd.f32 %v1298, 1.0
    %v1358 = vadd.f32 %v1300, 1.0
    %v1359 = vadd.f32 %v1302, 1.0
    %v1360 = vadd.f32 %v1304, 1.0
    %v1361 = vadd.f32 %v1306, 1.0
    %v1362 = vadd.f32 %v1308, 1.0
    %v1363 = vadd.f32 %v1310, 1.0
    %v1364 = vadd.f32 %v1312, 1.0
    %v1365 = vadd.f32 %v1314, 1.0
    %v1366 = vadd.f32 %v1316, 1.0
    %v1367 = vadd.f32 %v1318, 1.0
    %v1368 = vadd.f32 %v1320, 1.0
    %v1369 = vadd.f32 %v1322, 1.0
    %v1370 = vadd.f32 %v1324, 1.0
    %v1371 = vadd.f32 %v1326, 1.0
    %v1372 = vadd.f32 %v1328, 1.0
    %v1373 = vadd.f32 %v1330, 1.0
    %v1374 = vadd.f32 %v1332, 1.0
    %v1375 = vadd.f32 %v1334, 1.0
    %v1376 = vadd.f32 %v1336, 1.0
    %v1377 = vadd.f32 %v1338, 1.0
    %v1378 = vadd.f32 %v1340, 1.0
    %v1379 = vadd.f32 %v1342, 1.0
    %v1380 = vadd.f32 %v1344, 1.0
    %v1381 = vadd.f32 %v1346, 1.0
    %v1382 = vadd.f32 %v1348, 1.0
    %v1383 = vadd.f32 %v1350, 1.0
    %v1384 = vadd.f32 %v1352, 1.0
    %v1385 = vrcp.pop %v1353
    %v1386 = vmul.f32 %v1353, %v1385
    %v1387 = vsub.f32 1.0, %v1386
    %v1388 = vmul.f32 %v1385, %v1387
    %v1389 = vadd.f32 %v1385, %v1388
    %vm1390 = vweird.f32 %v1353
    %vm1391 = vweird.f32 %v1385
    %vm1392 = vmor %vm1390, %vm1391
    %v1393 = vsel %vm1392, %v1385, %v1389
    %v1394 = vand.u32 2147483647, %v1353
    %vm1395 = vcmp.eq.f32.partialorder %v1394, 8.507059e+37
    %v1396 = vand.u32 %v1353, 2147483648
    %v1397 = vor.u32 1.1754944e-38, %v1396
    %v1398 = vsel %vm1395, %v1397, %v1393
    %v1399 = vmul.f32 1.0, %v1398
    %v1400 = vrcp.pop %v1354
    %v1401 = vmul.f32 %v1354, %v1400
    %v1402 = vsub.f32 1.0, %v1401
    %v1403 = vmul.f32 %v1400, %v1402
    %v1404 = vadd.f32 %v1400, %v1403
    %vm1405 = vweird.f32 %v1354
    %vm1406 = vweird.f32 %v1400
    %vm1407 = vmor %vm1405, %vm1406
    %v1408 = vsel %vm1407, %v1400, %v1404
    %v1409 = vand.u32 2147483647, %v1354
    %vm1410 = vcmp.eq.f32.partialorder %v1409, 8.507059e+37
    %v1411 = vand.u32 %v1354, 2147483648
    %v1412 = vor.u32 1.1754944e-38, %v1411
    %v1413 = vsel %vm1410, %v1412, %v1408
    %v1414 = vmul.f32 1.0, %v1413
    %v1415 = vrcp.pop %v1355
    %v1416 = vmul.f32 %v1355, %v1415
    %v1417 = vsub.f32 1.0, %v1416
    %v1418 = vmul.f32 %v1415, %v1417
    %v1419 = vadd.f32 %v1415, %v1418
    %vm1420 = vweird.f32 %v1355
    %vm1421 = vweird.f32 %v1415
    %vm1422 = vmor %vm1420, %vm1421
    %v1423 = vsel %vm1422, %v1415, %v1419
    %v1424 = vand.u32 2147483647, %v1355
    %vm1425 = vcmp.eq.f32.partialorder %v1424, 8.507059e+37
    %v1426 = vand.u32 %v1355, 2147483648
    %v1427 = vor.u32 1.1754944e-38, %v1426
    %v1428 = vsel %vm1425, %v1427, %v1423
    %v1429 = vmul.f32 1.0, %v1428
    %v1430 = vrcp.pop %v1356
    %v1431 = vmul.f32 %v1356, %v1430
    %v1432 = vsub.f32 1.0, %v1431
    %v1433 = vmul.f32 %v1430, %v1432
    %v1434 = vadd.f32 %v1430, %v1433
    %vm1435 = vweird.f32 %v1356
    %vm1436 = vweird.f32 %v1430
    %vm1437 = vmor %vm1435, %vm1436
    %v1438 = vsel %vm1437, %v1430, %v1434
    %v1439 = vand.u32 2147483647, %v1356
    %vm1440 = vcmp.eq.f32.partialorder %v1439, 8.507059e+37
    %v1441 = vand.u32 %v1356, 2147483648
    %v1442 = vor.u32 1.1754944e-38, %v1441
    %v1443 = vsel %vm1440, %v1442, %v1438
    %v1444 = vmul.f32 1.0, %v1443
    %v1445 = vrcp.pop %v1357
    %v1446 = vmul.f32 %v1357, %v1445
    %v1447 = vsub.f32 1.0, %v1446
    %v1448 = vmul.f32 %v1445, %v1447
    %v1449 = vadd.f32 %v1445, %v1448
    %vm1450 = vweird.f32 %v1357
    %vm1451 = vweird.f32 %v1445
    %vm1452 = vmor %vm1450, %vm1451
    %v1453 = vsel %vm1452, %v1445, %v1449
    %v1454 = vand.u32 2147483647, %v1357
    %vm1455 = vcmp.eq.f32.partialorder %v1454, 8.507059e+37
    %v1456 = vand.u32 %v1357, 2147483648
    %v1457 = vor.u32 1.1754944e-38, %v1456
    %v1458 = vsel %vm1455, %v1457, %v1453
    %v1459 = vmul.f32 1.0, %v1458
    %v1460 = vrcp.pop %v1358
    %v1461 = vmul.f32 %v1358, %v1460
    %v1462 = vsub.f32 1.0, %v1461
    %v1463 = vmul.f32 %v1460, %v1462
    %v1464 = vadd.f32 %v1460, %v1463
    %vm1465 = vweird.f32 %v1358
    %vm1466 = vweird.f32 %v1460
    %vm1467 = vmor %vm1465, %vm1466
    %v1468 = vsel %vm1467, %v1460, %v1464
    %v1469 = vand.u32 2147483647, %v1358
    %vm1470 = vcmp.eq.f32.partialorder %v1469, 8.507059e+37
    %v1471 = vand.u32 %v1358, 2147483648
    %v1472 = vor.u32 1.1754944e-38, %v1471
    %v1473 = vsel %vm1470, %v1472, %v1468
    %v1474 = vmul.f32 1.0, %v1473
    %v1475 = vrcp.pop %v1359
    %v1476 = vmul.f32 %v1359, %v1475
    %v1477 = vsub.f32 1.0, %v1476
    %v1478 = vmul.f32 %v1475, %v1477
    %v1479 = vadd.f32 %v1475, %v1478
    %vm1480 = vweird.f32 %v1359
    %vm1481 = vweird.f32 %v1475
    %vm1482 = vmor %vm1480, %vm1481
    %v1483 = vsel %vm1482, %v1475, %v1479
    %v1484 = vand.u32 2147483647, %v1359
    %vm1485 = vcmp.eq.f32.partialorder %v1484, 8.507059e+37
    %v1486 = vand.u32 %v1359, 2147483648
    %v1487 = vor.u32 1.1754944e-38, %v1486
    %v1488 = vsel %vm1485, %v1487, %v1483
    %v1489 = vmul.f32 1.0, %v1488
    %v1490 = vrcp.pop %v1360
    %v1491 = vmul.f32 %v1360, %v1490
    %v1492 = vsub.f32 1.0, %v1491
    %v1493 = vmul.f32 %v1490, %v1492
    %v1494 = vadd.f32 %v1490, %v1493
    %vm1495 = vweird.f32 %v1360
    %vm1496 = vweird.f32 %v1490
    %vm1497 = vmor %vm1495, %vm1496
    %v1498 = vsel %vm1497, %v1490, %v1494
    %v1499 = vand.u32 2147483647, %v1360
    %vm1500 = vcmp.eq.f32.partialorder %v1499, 8.507059e+37
    %v1501 = vand.u32 %v1360, 2147483648
    %v1502 = vor.u32 1.1754944e-38, %v1501
    %v1503 = vsel %vm1500, %v1502, %v1498
    %v1504 = vmul.f32 1.0, %v1503
    %v1505 = vrcp.pop %v1361
    %v1506 = vmul.f32 %v1361, %v1505
    %v1507 = vsub.f32 1.0, %v1506
    %v1508 = vmul.f32 %v1505, %v1507
    %v1509 = vadd.f32 %v1505, %v1508
    %vm1510 = vweird.f32 %v1361
    %vm1511 = vweird.f32 %v1505
    %vm1512 = vmor %vm1510, %vm1511
    %v1513 = vsel %vm1512, %v1505, %v1509
    %v1514 = vand.u32 2147483647, %v1361
    %vm1515 = vcmp.eq.f32.partialorder %v1514, 8.507059e+37
    %v1516 = vand.u32 %v1361, 2147483648
    %v1517 = vor.u32 1.1754944e-38, %v1516
    %v1518 = vsel %vm1515, %v1517, %v1513
    %v1519 = vmul.f32 1.0, %v1518
    %v1520 = vrcp.pop %v1362
    %v1521 = vmul.f32 %v1362, %v1520
    %v1522 = vsub.f32 1.0, %v1521
    %v1523 = vmul.f32 %v1520, %v1522
    %v1524 = vadd.f32 %v1520, %v1523
    %vm1525 = vweird.f32 %v1362
    %vm1526 = vweird.f32 %v1520
    %vm1527 = vmor %vm1525, %vm1526
    %v1528 = vsel %vm1527, %v1520, %v1524
    %v1529 = vand.u32 2147483647, %v1362
    %vm1530 = vcmp.eq.f32.partialorder %v1529, 8.507059e+37
    %v1531 = vand.u32 %v1362, 2147483648
    %v1532 = vor.u32 1.1754944e-38, %v1531
    %v1533 = vsel %vm1530, %v1532, %v1528
    %v1534 = vmul.f32 1.0, %v1533
    %v1535 = vrcp.pop %v1363
    %v1536 = vmul.f32 %v1363, %v1535
    %v1537 = vsub.f32 1.0, %v1536
    %v1538 = vmul.f32 %v1535, %v1537
    %v1539 = vadd.f32 %v1535, %v1538
    %vm1540 = vweird.f32 %v1363
    %vm1541 = vweird.f32 %v1535
    %vm1542 = vmor %vm1540, %vm1541
    %v1543 = vsel %vm1542, %v1535, %v1539
    %v1544 = vand.u32 2147483647, %v1363
    %vm1545 = vcmp.eq.f32.partialorder %v1544, 8.507059e+37
    %v1546 = vand.u32 %v1363, 2147483648
    %v1547 = vor.u32 1.1754944e-38, %v1546
    %v1548 = vsel %vm1545, %v1547, %v1543
    %v1549 = vmul.f32 1.0, %v1548
    %v1550 = vrcp.pop %v1364
    %v1551 = vmul.f32 %v1364, %v1550
    %v1552 = vsub.f32 1.0, %v1551
    %v1553 = vmul.f32 %v1550, %v1552
    %v1554 = vadd.f32 %v1550, %v1553
    %vm1555 = vweird.f32 %v1364
    %vm1556 = vweird.f32 %v1550
    %vm1557 = vmor %vm1555, %vm1556
    %v1558 = vsel %vm1557, %v1550, %v1554
    %v1559 = vand.u32 2147483647, %v1364
    %vm1560 = vcmp.eq.f32.partialorder %v1559, 8.507059e+37
    %v1561 = vand.u32 %v1364, 2147483648
    %v1562 = vor.u32 1.1754944e-38, %v1561
    %v1563 = vsel %vm1560, %v1562, %v1558
    %v1564 = vmul.f32 1.0, %v1563
    %v1565 = vrcp.pop %v1365
    %v1566 = vmul.f32 %v1365, %v1565
    %v1567 = vsub.f32 1.0, %v1566
    %v1568 = vmul.f32 %v1565, %v1567
    %v1569 = vadd.f32 %v1565, %v1568
    %vm1570 = vweird.f32 %v1365
    %vm1571 = vweird.f32 %v1565
    %vm1572 = vmor %vm1570, %vm1571
    %v1573 = vsel %vm1572, %v1565, %v1569
    %v1574 = vand.u32 2147483647, %v1365
    %vm1575 = vcmp.eq.f32.partialorder %v1574, 8.507059e+37
    %v1576 = vand.u32 %v1365, 2147483648
    %v1577 = vor.u32 1.1754944e-38, %v1576
    %v1578 = vsel %vm1575, %v1577, %v1573
    %v1579 = vmul.f32 1.0, %v1578
    %v1580 = vrcp.pop %v1366
    %v1581 = vmul.f32 %v1366, %v1580
    %v1582 = vsub.f32 1.0, %v1581
    %v1583 = vmul.f32 %v1580, %v1582
    %v1584 = vadd.f32 %v1580, %v1583
    %vm1585 = vweird.f32 %v1366
    %vm1586 = vweird.f32 %v1580
    %vm1587 = vmor %vm1585, %vm1586
    %v1588 = vsel %vm1587, %v1580, %v1584
    %v1589 = vand.u32 2147483647, %v1366
    %vm1590 = vcmp.eq.f32.partialorder %v1589, 8.507059e+37
    %v1591 = vand.u32 %v1366, 2147483648
    %v1592 = vor.u32 1.1754944e-38, %v1591
    %v1593 = vsel %vm1590, %v1592, %v1588
    %v1594 = vmul.f32 1.0, %v1593
    %v1595 = vrcp.pop %v1367
    %v1596 = vmul.f32 %v1367, %v1595
    %v1597 = vsub.f32 1.0, %v1596
    %v1598 = vmul.f32 %v1595, %v1597
    %v1599 = vadd.f32 %v1595, %v1598
    %vm1600 = vweird.f32 %v1367
    %vm1601 = vweird.f32 %v1595
    %vm1602 = vmor %vm1600, %vm1601
    %v1603 = vsel %vm1602, %v1595, %v1599
    %v1604 = vand.u32 2147483647, %v1367
    %vm1605 = vcmp.eq.f32.partialorder %v1604, 8.507059e+37
    %v1606 = vand.u32 %v1367, 2147483648
    %v1607 = vor.u32 1.1754944e-38, %v1606
    %v1608 = vsel %vm1605, %v1607, %v1603
    %v1609 = vmul.f32 1.0, %v1608
    %v1610 = vrcp.pop %v1368
    %v1611 = vmul.f32 %v1368, %v1610
    %v1612 = vsub.f32 1.0, %v1611
    %v1613 = vmul.f32 %v1610, %v1612
    %v1614 = vadd.f32 %v1610, %v1613
    %vm1615 = vweird.f32 %v1368
    %vm1616 = vweird.f32 %v1610
    %vm1617 = vmor %vm1615, %vm1616
    %v1618 = vsel %vm1617, %v1610, %v1614
    %v1619 = vand.u32 2147483647, %v1368
    %vm1620 = vcmp.eq.f32.partialorder %v1619, 8.507059e+37
    %v1621 = vand.u32 %v1368, 2147483648
    %v1622 = vor.u32 1.1754944e-38, %v1621
    %v1623 = vsel %vm1620, %v1622, %v1618
    %v1624 = vmul.f32 1.0, %v1623
    %v1625 = vrcp.pop %v1369
    %v1626 = vmul.f32 %v1369, %v1625
    %v1627 = vsub.f32 1.0, %v1626
    %v1628 = vmul.f32 %v1625, %v1627
    %v1629 = vadd.f32 %v1625, %v1628
    %vm1630 = vweird.f32 %v1369
    %vm1631 = vweird.f32 %v1625
    %vm1632 = vmor %vm1630, %vm1631
    %v1633 = vsel %vm1632, %v1625, %v1629
    %v1634 = vand.u32 2147483647, %v1369
    %vm1635 = vcmp.eq.f32.partialorder %v1634, 8.507059e+37
    %v1636 = vand.u32 %v1369, 2147483648
    %v1637 = vor.u32 1.1754944e-38, %v1636
    %v1638 = vsel %vm1635, %v1637, %v1633
    %v1639 = vmul.f32 1.0, %v1638
    %v1640 = vrcp.pop %v1370
    %v1641 = vmul.f32 %v1370, %v1640
    %v1642 = vsub.f32 1.0, %v1641
    %v1643 = vmul.f32 %v1640, %v1642
    %v1644 = vadd.f32 %v1640, %v1643
    %vm1645 = vweird.f32 %v1370
    %vm1646 = vweird.f32 %v1640
    %vm1647 = vmor %vm1645, %vm1646
    %v1648 = vsel %vm1647, %v1640, %v1644
    %v1649 = vand.u32 2147483647, %v1370
    %vm1650 = vcmp.eq.f32.partialorder %v1649, 8.507059e+37
    %v1651 = vand.u32 %v1370, 2147483648
    %v1652 = vor.u32 1.1754944e-38, %v1651
    %v1653 = vsel %vm1650, %v1652, %v1648
    %v1654 = vmul.f32 1.0, %v1653
    %v1655 = vrcp.pop %v1371
    %v1656 = vmul.f32 %v1371, %v1655
    %v1657 = vsub.f32 1.0, %v1656
    %v1658 = vmul.f32 %v1655, %v1657
    %v1659 = vadd.f32 %v1655, %v1658
    %vm1660 = vweird.f32 %v1371
    %vm1661 = vweird.f32 %v1655
    %vm1662 = vmor %vm1660, %vm1661
    %v1663 = vsel %vm1662, %v1655, %v1659
    %v1664 = vand.u32 2147483647, %v1371
    %vm1665 = vcmp.eq.f32.partialorder %v1664, 8.507059e+37
    %v1666 = vand.u32 %v1371, 2147483648
    %v1667 = vor.u32 1.1754944e-38, %v1666
    %v1668 = vsel %vm1665, %v1667, %v1663
    %v1669 = vmul.f32 1.0, %v1668
    %v1670 = vrcp.pop %v1372
    %v1671 = vmul.f32 %v1372, %v1670
    %v1672 = vsub.f32 1.0, %v1671
    %v1673 = vmul.f32 %v1670, %v1672
    %v1674 = vadd.f32 %v1670, %v1673
    %vm1675 = vweird.f32 %v1372
    %vm1676 = vweird.f32 %v1670
    %vm1677 = vmor %vm1675, %vm1676
    %v1678 = vsel %vm1677, %v1670, %v1674
    %v1679 = vand.u32 2147483647, %v1372
    %vm1680 = vcmp.eq.f32.partialorder %v1679, 8.507059e+37
    %v1681 = vand.u32 %v1372, 2147483648
    %v1682 = vor.u32 1.1754944e-38, %v1681
    %v1683 = vsel %vm1680, %v1682, %v1678
    %v1684 = vmul.f32 1.0, %v1683
    %v1685 = vrcp.pop %v1373
    %v1686 = vmul.f32 %v1373, %v1685
    %v1687 = vsub.f32 1.0, %v1686
    %v1688 = vmul.f32 %v1685, %v1687
    %v1689 = vadd.f32 %v1685, %v1688
    %vm1690 = vweird.f32 %v1373
    %vm1691 = vweird.f32 %v1685
    %vm1692 = vmor %vm1690, %vm1691
    %v1693 = vsel %vm1692, %v1685, %v1689
    %v1694 = vand.u32 2147483647, %v1373
    %vm1695 = vcmp.eq.f32.partialorder %v1694, 8.507059e+37
    %v1696 = vand.u32 %v1373, 2147483648
    %v1697 = vor.u32 1.1754944e-38, %v1696
    %v1698 = vsel %vm1695, %v1697, %v1693
    %v1699 = vmul.f32 1.0, %v1698
    %v1700 = vrcp.pop %v1374
    %v1701 = vmul.f32 %v1374, %v1700
    %v1702 = vsub.f32 1.0, %v1701
    %v1703 = vmul.f32 %v1700, %v1702
    %v1704 = vadd.f32 %v1700, %v1703
    %vm1705 = vweird.f32 %v1374
    %vm1706 = vweird.f32 %v1700
    %vm1707 = vmor %vm1705, %vm1706
    %v1708 = vsel %vm1707, %v1700, %v1704
    %v1709 = vand.u32 2147483647, %v1374
    %vm1710 = vcmp.eq.f32.partialorder %v1709, 8.507059e+37
    %v1711 = vand.u32 %v1374, 2147483648
    %v1712 = vor.u32 1.1754944e-38, %v1711
    %v1713 = vsel %vm1710, %v1712, %v1708
    %v1714 = vmul.f32 1.0, %v1713
    %v1715 = vrcp.pop %v1375
    %v1716 = vmul.f32 %v1375, %v1715
    %v1717 = vsub.f32 1.0, %v1716
    %v1718 = vmul.f32 %v1715, %v1717
    %v1719 = vadd.f32 %v1715, %v1718
    %vm1720 = vweird.f32 %v1375
    %vm1721 = vweird.f32 %v1715
    %vm1722 = vmor %vm1720, %vm1721
    %v1723 = vsel %vm1722, %v1715, %v1719
    %v1724 = vand.u32 2147483647, %v1375
    %vm1725 = vcmp.eq.f32.partialorder %v1724, 8.507059e+37
    %v1726 = vand.u32 %v1375, 2147483648
    %v1727 = vor.u32 1.1754944e-38, %v1726
    %v1728 = vsel %vm1725, %v1727, %v1723
    %v1729 = vmul.f32 1.0, %v1728
    %v1730 = vrcp.pop %v1376
    %v1731 = vmul.f32 %v1376, %v1730
    %v1732 = vsub.f32 1.0, %v1731
    %v1733 = vmul.f32 %v1730, %v1732
    %v1734 = vadd.f32 %v1730, %v1733
    %vm1735 = vweird.f32 %v1376
    %vm1736 = vweird.f32 %v1730
    %vm1737 = vmor %vm1735, %vm1736
    %v1738 = vsel %vm1737, %v1730, %v1734
    %v1739 = vand.u32 2147483647, %v1376
    %vm1740 = vcmp.eq.f32.partialorder %v1739, 8.507059e+37
    %v1741 = vand.u32 %v1376, 2147483648
    %v1742 = vor.u32 1.1754944e-38, %v1741
    %v1743 = vsel %vm1740, %v1742, %v1738
    %v1744 = vmul.f32 1.0, %v1743
    %v1745 = vrcp.pop %v1377
    %v1746 = vmul.f32 %v1377, %v1745
    %v1747 = vsub.f32 1.0, %v1746
    %v1748 = vmul.f32 %v1745, %v1747
    %v1749 = vadd.f32 %v1745, %v1748
    %vm1750 = vweird.f32 %v1377
    %vm1751 = vweird.f32 %v1745
    %vm1752 = vmor %vm1750, %vm1751
    %v1753 = vsel %vm1752, %v1745, %v1749
    %v1754 = vand.u32 2147483647, %v1377
    %vm1755 = vcmp.eq.f32.partialorder %v1754, 8.507059e+37
    %v1756 = vand.u32 %v1377, 2147483648
    %v1757 = vor.u32 1.1754944e-38, %v1756
    %v1758 = vsel %vm1755, %v1757, %v1753
    %v1759 = vmul.f32 1.0, %v1758
    %v1760 = vrcp.pop %v1378
    %v1761 = vmul.f32 %v1378, %v1760
    %v1762 = vsub.f32 1.0, %v1761
    %v1763 = vmul.f32 %v1760, %v1762
    %v1764 = vadd.f32 %v1760, %v1763
    %vm1765 = vweird.f32 %v1378
    %vm1766 = vweird.f32 %v1760
    %vm1767 = vmor %vm1765, %vm1766
    %v1768 = vsel %vm1767, %v1760, %v1764
    %v1769 = vand.u32 2147483647, %v1378
    %vm1770 = vcmp.eq.f32.partialorder %v1769, 8.507059e+37
    %v1771 = vand.u32 %v1378, 2147483648
    %v1772 = vor.u32 1.1754944e-38, %v1771
    %v1773 = vsel %vm1770, %v1772, %v1768
    %v1774 = vmul.f32 1.0, %v1773
    %v1775 = vrcp.pop %v1379
    %v1776 = vmul.f32 %v1379, %v1775
    %v1777 = vsub.f32 1.0, %v1776
    %v1778 = vmul.f32 %v1775, %v1777
    %v1779 = vadd.f32 %v1775, %v1778
    %vm1780 = vweird.f32 %v1379
    %vm1781 = vweird.f32 %v1775
    %vm1782 = vmor %vm1780, %vm1781
    %v1783 = vsel %vm1782, %v1775, %v1779
    %v1784 = vand.u32 2147483647, %v1379
    %vm1785 = vcmp.eq.f32.partialorder %v1784, 8.507059e+37
    %v1786 = vand.u32 %v1379, 2147483648
    %v1787 = vor.u32 1.1754944e-38, %v1786
    %v1788 = vsel %vm1785, %v1787, %v1783
    %v1789 = vmul.f32 1.0, %v1788
    %v1790 = vrcp.pop %v1380
    %v1791 = vmul.f32 %v1380, %v1790
    %v1792 = vsub.f32 1.0, %v1791
    %v1793 = vmul.f32 %v1790, %v1792
    %v1794 = vadd.f32 %v1790, %v1793
    %vm1795 = vweird.f32 %v1380
    %vm1796 = vweird.f32 %v1790
    %vm1797 = vmor %vm1795, %vm1796
    %v1798 = vsel %vm1797, %v1790, %v1794
    %v1799 = vand.u32 2147483647, %v1380
    %vm1800 = vcmp.eq.f32.partialorder %v1799, 8.507059e+37
    %v1801 = vand.u32 %v1380, 2147483648
    %v1802 = vor.u32 1.1754944e-38, %v1801
    %v1803 = vsel %vm1800, %v1802, %v1798
    %v1804 = vmul.f32 1.0, %v1803
    %v1805 = vrcp.pop %v1381
    %v1806 = vmul.f32 %v1381, %v1805
    %v1807 = vsub.f32 1.0, %v1806
    %v1808 = vmul.f32 %v1805, %v1807
    %v1809 = vadd.f32 %v1805, %v1808
    %vm1810 = vweird.f32 %v1381
    %vm1811 = vweird.f32 %v1805
    %vm1812 = vmor %vm1810, %vm1811
    %v1813 = vsel %vm1812, %v1805, %v1809
    %v1814 = vand.u32 2147483647, %v1381
    %vm1815 = vcmp.eq.f32.partialorder %v1814, 8.507059e+37
    %v1816 = vand.u32 %v1381, 2147483648
    %v1817 = vor.u32 1.1754944e-38, %v1816
    %v1818 = vsel %vm1815, %v1817, %v1813
    %v1819 = vmul.f32 1.0, %v1818
    %v1820 = vrcp.pop %v1382
    %v1821 = vmul.f32 %v1382, %v1820
    %v1822 = vsub.f32 1.0, %v1821
    %v1823 = vmul.f32 %v1820, %v1822
    %v1824 = vadd.f32 %v1820, %v1823
    %vm1825 = vweird.f32 %v1382
    %vm1826 = vweird.f32 %v1820
    %vm1827 = vmor %vm1825, %vm1826
    %v1828 = vsel %vm1827, %v1820, %v1824
    %v1829 = vand.u32 2147483647, %v1382
    %vm1830 = vcmp.eq.f32.partialorder %v1829, 8.507059e+37
    %v1831 = vand.u32 %v1382, 2147483648
    %v1832 = vor.u32 1.1754944e-38, %v1831
    %v1833 = vsel %vm1830, %v1832, %v1828
    %v1834 = vmul.f32 1.0, %v1833
    %v1835 = vrcp.pop %v1383
    %v1836 = vmul.f32 %v1383, %v1835
    %v1837 = vsub.f32 1.0, %v1836
    %v1838 = vmul.f32 %v1835, %v1837
    %v1839 = vadd.f32 %v1835, %v1838
    %vm1840 = vweird.f32 %v1383
    %vm1841 = vweird.f32 %v1835
    %vm1842 = vmor %vm1840, %vm1841
    %v1843 = vsel %vm1842, %v1835, %v1839
    %v1844 = vand.u32 2147483647, %v1383
    %vm1845 = vcmp.eq.f32.partialorder %v1844, 8.507059e+37
    %v1846 = vand.u32 %v1383, 2147483648
    %v1847 = vor.u32 1.1754944e-38, %v1846
    %v1848 = vsel %vm1845, %v1847, %v1843
    %v1849 = vmul.f32 1.0, %v1848
    %v1850 = vrcp.pop %v1384
    %v1851 = vmul.f32 %v1384, %v1850
    %v1852 = vsub.f32 1.0, %v1851
    %v1853 = vmul.f32 %v1850, %v1852
    %v1854 = vadd.f32 %v1850, %v1853
    %vm1855 = vweird.f32 %v1384
    %vm1856 = vweird.f32 %v1850
    %vm1857 = vmor %vm1855, %vm1856
    %v1858 = vsel %vm1857, %v1850, %v1854
    %v1859 = vand.u32 2147483647, %v1384
    %vm1860 = vcmp.eq.f32.partialorder %v1859, 8.507059e+37
    %v1861 = vand.u32 %v1384, 2147483648
    %v1862 = vor.u32 1.1754944e-38, %v1861
    %v1863 = vsel %vm1860, %v1862, %v1858
    %v1864 = vmul.f32 1.0, %v1863
    %1865 = vst [vmem:[#allocation8] sm:$0xff] %v1399
    %1866 = vst [vmem:[#allocation8 + $0x8] sm:$0xff] %v1414
    %1867 = vst [vmem:[#allocation8 + $0x10] sm:$0xff] %v1429
    %1868 = vst [vmem:[#allocation8 + $0x18] sm:$0xff] %v1444
    %1869 = vst [vmem:[#allocation8 + $0x20] sm:$0xff] %v1459
    %1870 = vst [vmem:[#allocation8 + $0x28] sm:$0xff] %v1474
    %1871 = vst [vmem:[#allocation8 + $0x30] sm:$0xff] %v1489
    %1872 = vst [vmem:[#allocation8 + $0x38] sm:$0xff] %v1504
    %1873 = vst [vmem:[#allocation8 + $0x40] sm:$0xff] %v1519
    %1874 = vst [vmem:[#allocation8 + $0x48] sm:$0xff] %v1534
    %1875 = vst [vmem:[#allocation8 + $0x50] sm:$0xff] %v1549
    %1876 = vst [vmem:[#allocation8 + $0x58] sm:$0xff] %v1564
    %1877 = vst [vmem:[#allocation8 + $0x60] sm:$0xff] %v1579
    %1878 = vst [vmem:[#allocation8 + $0x68] sm:$0xff] %v1594
    %1879 = vst [vmem:[#allocation8 + $0x70] sm:$0xff] %v1609
    %1880 = vst [vmem:[#allocation8 + $0x78] sm:$0xff] %v1624
    %1881 = vst [vmem:[#allocation8 + $0x80] sm:$0xff] %v1639
    %1882 = vst [vmem:[#allocation8 + $0x88] sm:$0xff] %v1654
    %1883 = vst [vmem:[#allocation8 + $0x90] sm:$0xff] %v1669
    %1884 = vst [vmem:[#allocation8 + $0x98] sm:$0xff] %v1684
    %1885 = vst [vmem:[#allocation8 + $0xa0] sm:$0xff] %v1699
    %1886 = vst [vmem:[#allocation8 + $0xa8] sm:$0xff] %v1714
    %1887 = vst [vmem:[#allocation8 + $0xb0] sm:$0xff] %v1729
    %1888 = vst [vmem:[#allocation8 + $0xb8] sm:$0xff] %v1744
    %1889 = vst [vmem:[#allocation8 + $0xc0] sm:$0xff] %v1759
    %1890 = vst [vmem:[#allocation8 + $0xc8] sm:$0xff] %v1774
    %1891 = vst [vmem:[#allocation8 + $0xd0] sm:$0xff] %v1789
    %1892 = vst [vmem:[#allocation8 + $0xd8] sm:$0xff] %v1804
    %1893 = vst [vmem:[#allocation8 + $0xe0] sm:$0xff] %v1819
    %1894 = vst [vmem:[#allocation8 + $0xe8] sm:$0xff] %v1834
    %1895 = vst [vmem:[#allocation8 + $0xf0] sm:$0xff] %v1849
    %1896 = vst [vmem:[#allocation8 + $0xf8] sm:$0xff] %v1864
    %v1897 = vpack.c.bf16 %v675, %v892
    %v1898 = vpack.c.bf16 %v724, %v724
    %v1899 = vpack.c.bf16 %v677, %v893
    %v1900 = vpack.c.bf16 %v726, %v726
    %v1901 = vpack.c.bf16 %v680, %v894
    %v1902 = vpack.c.bf16 %v729, %v729
    %v1903 = vpack.c.bf16 %v682, %v895
    %v1904 = vpack.c.bf16 %v731, %v731
    %v1905 = vpack.c.bf16 %v685, %v896
    %v1906 = vpack.c.bf16 %v734, %v734
    %v1907 = vpack.c.bf16 %v687, %v897
    %v1908 = vpack.c.bf16 %v736, %v736
    %v1909 = vpack.c.bf16 %v690, %v898
    %v1910 = vpack.c.bf16 %v739, %v739
    %v1911 = vpack.c.bf16 %v692, %v899
    %v1912 = vpack.c.bf16 %v741, %v741
    %v1913 = vpack.c.bf16 %v695, %v900
    %v1914 = vpack.c.bf16 %v744, %v744
    %v1915 = vpack.c.bf16 %v697, %v901
    %v1916 = vpack.c.bf16 %v746, %v746
    %v1917 = vpack.c.bf16 %v700, %v902
    %v1918 = vpack.c.bf16 %v749, %v749
    %v1919 = vpack.c.bf16 %v702, %v903
    %v1920 = vpack.c.bf16 %v751, %v751
    %v1921 = vpack.c.bf16 %v705, %v904
    %v1922 = vpack.c.bf16 %v754, %v754
    %v1923 = vpack.c.bf16 %v707, %v905
    %v1924 = vpack.c.bf16 %v756, %v756
    %v1925 = vpack.c.bf16 %v710, %v906
    %v1926 = vpack.c.bf16 %v759, %v759
    %v1927 = vpack.c.bf16 %v712, %v907
    %v1928 = vpack.c.bf16 %v761, %v761
    %1929 = vst [vmem:[%s13] sm:$0xff] %v1897
    %1930 = vst [vmem:[%s13 + $0x8] sm:$0xf] %v1898
    %1931 = vst [vmem:[%s13 + $0xc] sm:$0xff] %v1899
    %1932 = vst [vmem:[%s13 + $0x14] sm:$0xf] %v1900
    %1933 = vst [vmem:[%s13 + $0x18] sm:$0xff] %v1901
    %1934 = vst [vmem:[%s13 + $0x20] sm:$0xf] %v1902
    %1935 = vst [vmem:[%s13 + $0x24] sm:$0xff] %v1903
    %1936 = vst [vmem:[%s13 + $0x2c] sm:$0xf] %v1904
    %1937 = vst [vmem:[%s13 + $0x30] sm:$0xff] %v1905
    %1938 = vst [vmem:[%s13 + $0x38] sm:$0xf] %v1906
    %1939 = vst [vmem:[%s13 + $0x3c] sm:$0xff] %v1907
    %1940 = vst [vmem:[%s13 + $0x44] sm:$0xf] %v1908
    %1941 = vst [vmem:[%s13 + $0x48] sm:$0xff] %v1909
    %1942 = vst [vmem:[%s13 + $0x50] sm:$0xf] %v1910
    %1943 = vst [vmem:[%s13 + $0x54] sm:$0xff] %v1911
    %1944 = vst [vmem:[%s13 + $0x5c] sm:$0xf] %v1912
    %1945 = vst [vmem:[%s13 + $0x60] sm:$0xff] %v1913
    %1946 = vst [vmem:[%s13 + $0x68] sm:$0xf] %v1914
    %1947 = vst [vmem:[%s13 + $0x6c] sm:$0xff] %v1915
    %1948 = vst [vmem:[%s13 + $0x74] sm:$0xf] %v1916
    %1949 = vst [vmem:[%s13 + $0x78] sm:$0xff] %v1917
    %1950 = vst [vmem:[%s13 + $0x80] sm:$0xf] %v1918
    %1951 = vst [vmem:[%s13 + $0x84] sm:$0xff] %v1919
    %1952 = vst [vmem:[%s13 + $0x8c] sm:$0xf] %v1920
    %1953 = vst [vmem:[%s13 + $0x90] sm:$0xff] %v1921
    %1954 = vst [vmem:[%s13 + $0x98] sm:$0xf] %v1922
    %1955 = vst [vmem:[%s13 + $0x9c] sm:$0xff] %v1923
    %1956 = vst [vmem:[%s13 + $0xa4] sm:$0xf] %v1924
    %1957 = vst [vmem:[%s13 + $0xa8] sm:$0xff] %v1925
    %1958 = vst [vmem:[%s13 + $0xb0] sm:$0xf] %v1926
    %1959 = vst [vmem:[%s13 + $0xb4] sm:$0xff] %v1927
    %1960 = vst [vmem:[%s13 + $0xbc] sm:$0xf] %v1928
    // Predicated region
    $region58: #{vae_forward.1} parent=1 // pred_check
      _
    $region59: #{vae_forward.1} parent=1 // pred_check_branch
      %1962 = sbr.rel (0) target = $region61
    $region60: #{vae_forward.1} parent=1 // pred_region
      %1964 = vsyncadd [#allocation5], 0
      %s1965 = sshll.u32 [#allocation8], 4
      %s1966 = int_to_ptr.vmem [resolvable:$true] %s1965
      %s1967 = sshll.u32 %s12, 4
      %s1968 = int_to_ptr.hbm [resolvable:$true] %s1967
      %1973 = dma.vmem_to_hbm [thread:$0]  %s1966, 4096, %s1968, [#allocation5], 256, 256, 16
    $region61: #{vae_forward.1} parent=1 // pred_fallthru
      _
    // Predicated region
    $region62: #{vae_forward.1} parent=1 // pred_check
      _
    $region63: #{vae_forward.1} parent=1 // pred_check_branch
      %1975 = sbr.rel (0) target = $region65
    $region64: #{vae_forward.1} parent=1 // pred_region
      _
    $region65: #{vae_forward.1} parent=1 // pred_fallthru
      _
    // Predicated region
    $region66: #{vae_forward.1} parent=1 // pred_check
      _
    $region67: #{vae_forward.1} parent=1 // pred_check_branch
      %1977 = sbr.rel (0) target = $region69
    $region68: #{vae_forward.1} parent=1 // pred_region
      %1979 = dma.done [#allocation5], 4096
    $region69: #{vae_forward.1} parent=1 // pred_fallthru
      _
    // Predicated region
    $region70: #{vae_forward.1} parent=1 // pred_check
      _
    $region71: #{vae_forward.1} parent=1 // pred_check_branch
      %1981 = sbr.rel (0) target = $region73
    $region72: #{vae_forward.1} parent=1 // pred_region
      _
    $region73: #{vae_forward.1} parent=1 // pred_fallthru
      _
    %1982 = vsyncpa [#allocation4], 1
    %1983 = vsyncpa [#allocation7], 1
    %1984 = vsyncpa [#allocation5], 1

</llo_original>
